<compile_context>
chip_gen: v5e
topology: v5e:2x2
jax: 0.10.0
libtpu: 0.0.40
codegen_flags: <defaults>
</compile_context>

<pallas_src>
import functools

import jax
import jax.numpy as jnp
from jax.experimental import pallas as pl
from jax.experimental.pallas import tpu as pltpu


# ----------------------------------------------------------------------------
# In-kernel helpers
# ----------------------------------------------------------------------------
def _avgpool_hw(scr_ref, v, H, W, s):
    """AvgPool2d(kernel=s, stride=s) of v:(H, W, C) f32 -> (H//s, W//s, C) f32.

    H pooling uses a free leading-dim reshape + integer indexing; W pooling
    uses sublane-strided VMEM reads through scr_ref (shape (H//s, W, C)).
    """
    Ho, Wo = H // s, W // s
    C = v.shape[-1]
    v4 = v.reshape(Ho, s, W, C)                 # leading-dim split: free
    rows = v4[:, 0]
    for di in range(1, s):
        rows = rows + v4[:, di]                 # (Ho, W, C)
    scr_ref[...] = rows
    acc = scr_ref[:, pl.ds(0, Wo, s), :]        # sublane-strided read
    for dj in range(1, s):
        acc = acc + scr_ref[:, pl.ds(dj, Wo, s), :]
    return acc * (1.0 / (s * s))                # (Ho, Wo, C)


# ----------------------------------------------------------------------------
# Pallas kernel (one batch image per grid step)
# ----------------------------------------------------------------------------
def _bottleneck_kernel(*refs, H, W, Cin, P, stride, has_downsample):
    C4 = 4 * P
    Ho, Wo = H // stride, W // stride
    bf16, f32 = jnp.bfloat16, jnp.float32

    (x_ref, w1_ref, s1_ref, b1_ref, w2_ref, s2_ref, b2_ref,
     w3_ref, s3_ref, b3_ref) = refs[:10]
    pos = 10
    if has_downsample:
        wd_ref, sd_ref, bd_ref = refs[pos:pos + 3]
        pos += 3
    o_ref = refs[pos]
    scr = refs[pos + 1:]   # [(Ho,W,P)] (+ [(Ho,W,Cin)] if downsample) when stride>1

    x = x_ref[0]                                   # (H, W, Cin) f32
    xf = x.reshape(H * W, Cin)

    # ---- conv1 (1x1, no bias) + bn1 (folded) + relu --------------------------
    h1 = jnp.dot(xf.astype(bf16), w1_ref[...], preferred_element_type=f32)
    h1 = jnp.maximum(h1 * s1_ref[...] + b1_ref[...], 0.0)          # (H*W, P) f32

    # ---- conv2 (3x3, pad=1) as ONE im2col matmul, K = 9*P --------------------
    hb = h1.astype(bf16).reshape(H, W, P)
    zr = jnp.zeros((1, W, P), bf16)
    hp = jnp.concatenate([zr, hb, zr], axis=0)                     # (H+2, W, P)
    zc = jnp.zeros((H + 2, 1, P), bf16)
    hp = jnp.concatenate([zc, hp, zc], axis=1)                     # (H+2, W+2, P)
    taps = [hp[dy:dy + H, dx:dx + W, :] for dy in range(3) for dx in range(3)]
    patches = jnp.concatenate(taps, axis=-1).reshape(H * W, 9 * P)  # bf16
    h2 = jnp.dot(patches, w2_ref[...], preferred_element_type=f32)
    h2 = jnp.maximum(h2 * s2_ref[...] + b2_ref[...], 0.0)          # (H*W, P) f32

    # ---- avgpool(kernel=stride, stride=stride), no pooling matrix ------------
    if stride > 1:
        h2 = _avgpool_hw(scr[0], h2.reshape(H, W, P), H, W, stride)
        h2 = h2.reshape(Ho * Wo, P)

    # ---- conv3 (1x1) + bn3 (no relu yet) --------------------------------------
    out = jnp.dot(h2.astype(bf16), w3_ref[...], preferred_element_type=f32)
    out = out * s3_ref[...] + b3_ref[...]                           # (Ho*Wo, C4)

    # ---- identity / downsample path -------------------------------------------
    if has_downsample:
        if stride > 1:
            idn = _avgpool_hw(scr[1], x, H, W, stride).reshape(Ho * Wo, Cin)
        else:
            idn = xf
        idn = jnp.dot(idn.astype(bf16), wd_ref[...], preferred_element_type=f32)
        idn = idn * sd_ref[...] + bd_ref[...]
    else:
        idn = xf                                   # stride == 1 and Cin == 4*P

    # ---- residual add + final relu --------------------------------------------
    o_ref[0] = jnp.maximum(out + idn, 0.0).reshape(Ho, Wo, C4)


# ----------------------------------------------------------------------------
# Wrapper (NHWC in / NHWC out; transpose once at network entry for NCHW nets)
# ----------------------------------------------------------------------------
def bottleneck_forward_nhwc(x_nhwc, params, *, stride):
    N, H, W, Cin = x_nhwc.shape
    P = params["w1"].shape[1]
    C4 = 4 * P
    assert H % stride == 0 and W % stride == 0, (H, W, stride)
    Ho, Wo = H // stride, W // stride
    has_downsample = (stride > 1) or (Cin != C4)

    args = [x_nhwc.astype(jnp.float32),
            params["w1"], params["s1"], params["b1"],
            params["w2"], params["s2"], params["b2"],
            params["w3"], params["s3"], params["b3"]]
    if has_downsample:
        args += [params["wd"], params["sd"], params["bd"]]

    def const_spec(a):                      # full-array block, never re-fetched
        zeros = (0,) * a.ndim
        return pl.BlockSpec(a.shape, lambda n, _z=zeros: _z)

    in_specs = [pl.BlockSpec((1, H, W, Cin), lambda n: (n, 0, 0, 0))]
    in_specs += [const_spec(a) for a in args[1:]]
    out_specs = pl.BlockSpec((1, Ho, Wo, C4), lambda n: (n, 0, 0, 0))

    scratch_shapes = []
    if stride > 1:
        scratch_shapes.append(pltpu.VMEM((Ho, W, P), jnp.float32))
        if has_downsample:
            scratch_shapes.append(pltpu.VMEM((Ho, W, Cin), jnp.float32))

    flops = 2 * N * H * W * (Cin * P + 9 * P * P) + 2 * N * Ho * Wo * P * C4
    if has_downsample:
        flops += 2 * N * Ho * Wo * Cin * C4
    bytes_accessed = sum(int(a.size) * a.dtype.itemsize for a in args)
    bytes_accessed += N * Ho * Wo * C4 * 4

    kernel = functools.partial(_bottleneck_kernel, H=H, W=W, Cin=Cin, P=P,
                               stride=stride, has_downsample=has_downsample)

    return pl.pallas_call(
        kernel,
        out_shape=jax.ShapeDtypeStruct((N, Ho, Wo, C4), jnp.float32),
        grid=(N,),
        in_specs=in_specs,
        out_specs=out_specs,
        scratch_shapes=scratch_shapes,
        compiler_params=pltpu.CompilerParams(
            dimension_semantics=("parallel",),         # 2x on v7x's two TCs
            vmem_limit_bytes=32 * 1024 * 1024),        # fits v5e/v6e/v7x budgets
        cost_estimate=pl.CostEstimate(flops=flops, transcendentals=0,
                                      bytes_accessed=bytes_accessed),
    )(*args)


# ----------------------------------------------------------------------------
# Deterministic synthetic parameters (conv weights in bf16 + folded eval BN)
# ----------------------------------------------------------------------------
def init_params(key, inplanes, planes):
    C4 = 4 * planes
    ks = jax.random.split(key, 4)

    def bn_fold(c, base):
        gamma = 1.0 + 0.05 * jnp.arange(c, dtype=jnp.float32)
        beta = 0.02 * jnp.arange(c, dtype=jnp.float32) - 0.01 * base
        mean = 0.03 * jnp.arange(c, dtype=jnp.float32)
        var = 1.0 + 0.1 * jnp.arange(c, dtype=jnp.float32)
        scale = gamma / jnp.sqrt(var + 1e-5)
        bias = beta - mean * scale
        return scale.reshape(1, c), bias.reshape(1, c)

    bf16 = jnp.bfloat16
    w1 = (0.1 * jax.random.normal(ks[0], (inplanes, planes), jnp.float32)).astype(bf16)
    w2 = (0.1 * jax.random.normal(ks[1], (3, 3, planes, planes), jnp.float32)).astype(bf16)
    w3 = (0.1 * jax.random.normal(ks[2], (planes, C4), jnp.float32)).astype(bf16)
    wd = (0.1 * jax.random.normal(ks[3], (inplanes, C4), jnp.float32)).astype(bf16)
    s1, b1 = bn_fold(planes, 1.0)
    s2, b2 = bn_fold(planes, 2.0)
    s3, b3 = bn_fold(C4, 3.0)
    sd, bd = bn_fold(C4, 4.0)
    return dict(w1=w1, s1=s1, b1=b1,
                w2=w2.reshape(9 * planes, planes), s2=s2, b2=b2,   # (9P, P) im2col layout
                w3=w3, s3=s3, b3=b3,
                wd=wd, sd=sd, bd=bd)


# ----------------------------------------------------------------------------
# Plain-JAX reference (same folded-BN + bf16-matmul semantics), NHWC
# ----------------------------------------------------------------------------
def reference_forward_nhwc(x, params, *, stride):
    bf16, f32 = jnp.bfloat16, jnp.float32
    Cin = x.shape[-1]
    P = params["w1"].shape[1]
    C4 = 4 * P
    dn = ('NHWC', 'HWIO', 'NHWC')

    def conv(v, w, pad):
        return jax.lax.conv_general_dilated(
            v.astype(bf16), w.astype(bf16), (1, 1), pad,
            dimension_numbers=dn, preferred_element_type=f32)

    def avgpool(v, s):
        return jax.lax.reduce_window(v, 0.0, jax.lax.add,
                                     (1, s, s, 1), (1, s, s, 1), 'VALID') / (s * s)

    x = x.astype(f32)
    h = conv(x, params["w1"].reshape(1, 1, Cin, P), 'VALID')
    h = jnp.maximum(h * params["s1"] + params["b1"], 0.0)
    h = conv(h, params["w2"].reshape(3, 3, P, P), 'SAME')
    h = jnp.maximum(h * params["s2"] + params["b2"], 0.0)
    if stride > 1:
        h = avgpool(h, stride)
    out = conv(h, params["w3"].reshape(1, 1, P, C4), 'VALID')
    out = out * params["s3"] + params["b3"]
    if stride > 1 or Cin != C4:
        idn = avgpool(x, stride) if stride > 1 else x
        idn = conv(idn, params["wd"].reshape(1, 1, Cin, C4), 'VALID')
        idn = idn * params["sd"] + params["bd"]
    else:
        idn = x
    return jnp.maximum(out + idn, 0.0)


if __name__ == "__main__":
    key = jax.random.PRNGKey(0)
    k1, k2, kp1, kp2 = jax.random.split(key, 4)

    # Tolerance note: MXU inputs are bf16 (per perf review), so intermediate
    # activations are rounded to ~2^-8 relative at each matmul input; with
    # f32 accumulation the end-to-end mismatch vs the (also bf16) reference
    # is at the few-1e-3..1e-2 level at these activation magnitudes.
    ATOL, RTOL = 3e-2, 3e-3

    # --- Config A: stride-2 block with downsample branch ---------------------
    N, inplanes, planes, stride, H, W = 2, 64, 32, 2, 16, 16
    x_nchw = jax.random.normal(k1, (N, inplanes, H, W), jnp.float32)
    x = jnp.transpose(x_nchw, (0, 2, 3, 1))     # single NCHW->NHWC at network entry
    params = init_params(kp1, inplanes, planes)
    out = jax.block_until_ready(bottleneck_forward_nhwc(x, params, stride=stride))
    ref = reference_forward_nhwc(x, params, stride=stride)
    assert out.shape == (N, H // stride, W // stride, 4 * planes), out.shape
    assert bool(jnp.allclose(out, ref, atol=ATOL, rtol=RTOL)), \
        float(jnp.max(jnp.abs(out - ref)))

    # --- Config B: stride-1 identity block (no downsample, no pooling) -------
    inplanes_b, planes_b = 128, 32
    x_b = jax.random.normal(k2, (N, H, W, inplanes_b), jnp.float32)
    params_b = init_params(kp2, inplanes_b, planes_b)
    out_b = jax.block_until_ready(bottleneck_forward_nhwc(x_b, params_b, stride=1))
    ref_b = reference_forward_nhwc(x_b, params_b, stride=1)
    assert out_b.shape == (N, H, W, 4 * planes_b), out_b.shape
    assert bool(jnp.allclose(out_b, ref_b, atol=ATOL, rtol=RTOL)), \
        float(jnp.max(jnp.abs(out_b - ref_b)))

    print("KERNEL_OK")
</pallas_src>

<mosaic_0001>
module attributes {stable_mosaic.version = 11 : i64} {
  func.func @_bottleneck_kernel(%arg0: i32, %arg1: memref<1x16x16x64xf32, #tpu.memory_space<vmem>>, %arg2: memref<64x32xbf16, #tpu.memory_space<vmem>>, %arg3: memref<1x32xf32, #tpu.memory_space<vmem>>, %arg4: memref<1x32xf32, #tpu.memory_space<vmem>>, %arg5: memref<288x32xbf16, #tpu.memory_space<vmem>>, %arg6: memref<1x32xf32, #tpu.memory_space<vmem>>, %arg7: memref<1x32xf32, #tpu.memory_space<vmem>>, %arg8: memref<32x128xbf16, #tpu.memory_space<vmem>>, %arg9: memref<1x128xf32, #tpu.memory_space<vmem>>, %arg10: memref<1x128xf32, #tpu.memory_space<vmem>>, %arg11: memref<64x128xbf16, #tpu.memory_space<vmem>>, %arg12: memref<1x128xf32, #tpu.memory_space<vmem>>, %arg13: memref<1x128xf32, #tpu.memory_space<vmem>>, %arg14: memref<1x8x8x128xf32, #tpu.memory_space<vmem>>, %arg15: memref<8x16x32xf32, #tpu.memory_space<vmem>>, %arg16: memref<8x16x64xf32, #tpu.memory_space<vmem>>) attributes {dimension_semantics = [#tpu.dimension_semantics<parallel>], iteration_bounds = array<i64: 2>, scalar_prefetch = 0 : i64, scratch_operands = 2 : i64, tpu.core_type = #tpu.core_type<tc>, window_params = [{transform_indices = @transform_0, window_bounds = array<i64: 1, 16, 16, 64>}, {pipeline_mode = #tpu.pipeline_mode<synchronous>, transform_indices = @transform_1, window_bounds = array<i64: 64, 32>}, {pipeline_mode = #tpu.pipeline_mode<synchronous>, transform_indices = @transform_2, window_bounds = array<i64: 1, 32>}, {pipeline_mode = #tpu.pipeline_mode<synchronous>, transform_indices = @transform_3, window_bounds = array<i64: 1, 32>}, {pipeline_mode = #tpu.pipeline_mode<synchronous>, transform_indices = @transform_4, window_bounds = array<i64: 288, 32>}, {pipeline_mode = #tpu.pipeline_mode<synchronous>, transform_indices = @transform_5, window_bounds = array<i64: 1, 32>}, {pipeline_mode = #tpu.pipeline_mode<synchronous>, transform_indices = @transform_6, window_bounds = array<i64: 1, 32>}, {pipeline_mode = #tpu.pipeline_mode<synchronous>, transform_indices = @transform_7, window_bounds = array<i64: 32, 128>}, {pipeline_mode = #tpu.pipeline_mode<synchronous>, transform_indices = @transform_8, window_bounds = array<i64: 1, 128>}, {pipeline_mode = #tpu.pipeline_mode<synchronous>, transform_indices = @transform_9, window_bounds = array<i64: 1, 128>}, {pipeline_mode = #tpu.pipeline_mode<synchronous>, transform_indices = @transform_10, window_bounds = array<i64: 64, 128>}, {pipeline_mode = #tpu.pipeline_mode<synchronous>, transform_indices = @transform_11, window_bounds = array<i64: 1, 128>}, {pipeline_mode = #tpu.pipeline_mode<synchronous>, transform_indices = @transform_12, window_bounds = array<i64: 1, 128>}, {transform_indices = @transform_13, window_bounds = array<i64: 1, 8, 8, 128>}]} {
    %c0 = arith.constant 0 : index
    %c0_0 = arith.constant 0 : index
    %c0_1 = arith.constant 0 : index
    %c0_2 = arith.constant 0 : index
    %0 = vector.load %arg1[%c0, %c0_0, %c0_1, %c0_2] : memref<1x16x16x64xf32, #tpu.memory_space<vmem>>, vector<1x16x16x64xf32>
    %1 = vector.shape_cast %0 : vector<1x16x16x64xf32> to vector<16x16x64xf32>
    %2 = vector.shape_cast %1 : vector<16x16x64xf32> to vector<256x64xf32>
    %3 = arith.truncf %2 : vector<256x64xf32> to vector<256x64xbf16>
    %c0_3 = arith.constant 0 : index
    %c0_4 = arith.constant 0 : index
    %4 = vector.load %arg2[%c0_3, %c0_4] : memref<64x32xbf16, #tpu.memory_space<vmem>>, vector<64x32xbf16>
    %cst = arith.constant dense<0.000000e+00> : vector<256x32xf32>
    %5 = tpu.matmul %3, %4, %cst {dimension_numbers = #tpu.dot_dimension_numbers<[1], [0], [0], [1], [0, 0, 1, 1], [], []>} : vector<256x64xbf16>, vector<64x32xbf16>, vector<256x32xf32> -> vector<256x32xf32>
    %c0_5 = arith.constant 0 : index
    %c0_6 = arith.constant 0 : index
    %6 = vector.load %arg3[%c0_5, %c0_6] : memref<1x32xf32, #tpu.memory_space<vmem>>, vector<1x32xf32>
    %7 = vector.broadcast %6 : vector<1x32xf32> to vector<256x32xf32>
    %8 = arith.mulf %5, %7 : vector<256x32xf32>
    %c0_7 = arith.constant 0 : index
    %c0_8 = arith.constant 0 : index
    %9 = vector.load %arg4[%c0_7, %c0_8] : memref<1x32xf32, #tpu.memory_space<vmem>>, vector<1x32xf32>
    %10 = vector.broadcast %9 : vector<1x32xf32> to vector<256x32xf32>
    %11 = arith.addf %8, %10 : vector<256x32xf32>
    %cst_9 = arith.constant 0.000000e+00 : f32
    %12 = vector.broadcast %cst_9 : f32 to vector<256x32xf32>
    %13 = arith.maximumf %11, %12 : vector<256x32xf32>
    %14 = arith.truncf %13 : vector<256x32xf32> to vector<256x32xbf16>
    %15 = vector.shape_cast %14 : vector<256x32xbf16> to vector<16x16x32xbf16>
    %cst_10 = arith.constant 0.000000e+00 : bf16
    %16 = vector.broadcast %cst_10 : bf16 to vector<1x16x32xbf16>
    %17 = tpu.concatenate %16, %15, %16 in 0 : vector<1x16x32xbf16>, vector<16x16x32xbf16>, vector<1x16x32xbf16> -> vector<18x16x32xbf16>
    %cst_11 = arith.constant 0.000000e+00 : bf16
    %18 = vector.broadcast %cst_11 : bf16 to vector<18x1x32xbf16>
    %19 = tpu.concatenate %18, %17, %18 in 1 : vector<18x1x32xbf16>, vector<18x16x32xbf16>, vector<18x1x32xbf16> -> vector<18x18x32xbf16>
    %20 = vector.extract_strided_slice %19 {offsets = [0, 0, 0], sizes = [16, 16, 32], strides = [1, 1, 1]} : vector<18x18x32xbf16> to vector<16x16x32xbf16>
    %21 = vector.extract_strided_slice %19 {offsets = [0, 1, 0], sizes = [16, 16, 32], strides = [1, 1, 1]} : vector<18x18x32xbf16> to vector<16x16x32xbf16>
    %22 = vector.extract_strided_slice %19 {offsets = [0, 2, 0], sizes = [16, 16, 32], strides = [1, 1, 1]} : vector<18x18x32xbf16> to vector<16x16x32xbf16>
    %23 = vector.extract_strided_slice %19 {offsets = [1, 0, 0], sizes = [16, 16, 32], strides = [1, 1, 1]} : vector<18x18x32xbf16> to vector<16x16x32xbf16>
    %24 = vector.extract_strided_slice %19 {offsets = [1, 1, 0], sizes = [16, 16, 32], strides = [1, 1, 1]} : vector<18x18x32xbf16> to vector<16x16x32xbf16>
    %25 = vector.extract_strided_slice %19 {offsets = [1, 2, 0], sizes = [16, 16, 32], strides = [1, 1, 1]} : vector<18x18x32xbf16> to vector<16x16x32xbf16>
    %26 = vector.extract_strided_slice %19 {offsets = [2, 0, 0], sizes = [16, 16, 32], strides = [1, 1, 1]} : vector<18x18x32xbf16> to vector<16x16x32xbf16>
    %27 = vector.extract_strided_slice %19 {offsets = [2, 1, 0], sizes = [16, 16, 32], strides = [1, 1, 1]} : vector<18x18x32xbf16> to vector<16x16x32xbf16>
    %28 = vector.extract_strided_slice %19 {offsets = [2, 2, 0], sizes = [16, 16, 32], strides = [1, 1, 1]} : vector<18x18x32xbf16> to vector<16x16x32xbf16>
    %29 = tpu.concatenate %20, %21, %22, %23, %24, %25, %26, %27, %28 in 2 : vector<16x16x32xbf16>, vector<16x16x32xbf16>, vector<16x16x32xbf16>, vector<16x16x32xbf16>, vector<16x16x32xbf16>, vector<16x16x32xbf16>, vector<16x16x32xbf16>, vector<16x16x32xbf16>, vector<16x16x32xbf16> -> vector<16x16x288xbf16>
    %30 = vector.shape_cast %29 : vector<16x16x288xbf16> to vector<256x288xbf16>
    %c0_12 = arith.constant 0 : index
    %c0_13 = arith.constant 0 : index
    %31 = vector.load %arg5[%c0_12, %c0_13] : memref<288x32xbf16, #tpu.memory_space<vmem>>, vector<288x32xbf16>
    %cst_14 = arith.constant dense<0.000000e+00> : vector<256x32xf32>
    %32 = tpu.matmul %30, %31, %cst_14 {dimension_numbers = #tpu.dot_dimension_numbers<[1], [0], [0], [1], [0, 0, 1, 1], [], []>} : vector<256x288xbf16>, vector<288x32xbf16>, vector<256x32xf32> -> vector<256x32xf32>
    %c0_15 = arith.constant 0 : index
    %c0_16 = arith.constant 0 : index
    %33 = vector.load %arg6[%c0_15, %c0_16] : memref<1x32xf32, #tpu.memory_space<vmem>>, vector<1x32xf32>
    %34 = vector.broadcast %33 : vector<1x32xf32> to vector<256x32xf32>
    %35 = arith.mulf %32, %34 : vector<256x32xf32>
    %c0_17 = arith.constant 0 : index
    %c0_18 = arith.constant 0 : index
    %36 = vector.load %arg7[%c0_17, %c0_18] : memref<1x32xf32, #tpu.memory_space<vmem>>, vector<1x32xf32>
    %37 = vector.broadcast %36 : vector<1x32xf32> to vector<256x32xf32>
    %38 = arith.addf %35, %37 : vector<256x32xf32>
    %cst_19 = arith.constant 0.000000e+00 : f32
    %39 = vector.broadcast %cst_19 : f32 to vector<256x32xf32>
    %40 = arith.maximumf %38, %39 : vector<256x32xf32>
    %41 = vector.shape_cast %40 : vector<256x32xf32> to vector<16x16x32xf32>
    %42 = vector.shape_cast %41 : vector<16x16x32xf32> to vector<8x2x16x32xf32>
    %43 = vector.extract_strided_slice %42 {offsets = [0, 0, 0, 0], sizes = [8, 1, 16, 32], strides = [1, 1, 1, 1]} : vector<8x2x16x32xf32> to vector<8x1x16x32xf32>
    %44 = vector.shape_cast %43 : vector<8x1x16x32xf32> to vector<8x16x32xf32>
    %45 = vector.extract_strided_slice %42 {offsets = [0, 1, 0, 0], sizes = [8, 1, 16, 32], strides = [1, 1, 1, 1]} : vector<8x2x16x32xf32> to vector<8x1x16x32xf32>
    %46 = vector.shape_cast %45 : vector<8x1x16x32xf32> to vector<8x16x32xf32>
    %47 = arith.addf %44, %46 : vector<8x16x32xf32>
    %c0_20 = arith.constant 0 : index
    %c0_21 = arith.constant 0 : index
    %c0_22 = arith.constant 0 : index
    %48 = vector.load %arg15[%c0_20, %c0_21, %c0_22] : memref<8x16x32xf32, #tpu.memory_space<vmem>>, vector<8x16x32xf32>
    tpu.vector_store %arg15[%c0_20, %c0_21, %c0_22], %47 {strides = array<i32>} : memref<8x16x32xf32, #tpu.memory_space<vmem>>, vector<8x16x32xf32>,
    %c0_23 = arith.constant 0 : index
    %c0_24 = arith.constant 0 : index
    %c0_25 = arith.constant 0 : index
    %49 = tpu.strided_load %arg15[%c0_23, %c0_24, %c0_25] {strides = array<i32: 1, 2, 1>} : memref<8x16x32xf32, #tpu.memory_space<vmem>>, vector<8x8x32xf32>
    %c0_26 = arith.constant 0 : index
    %c1 = arith.constant 1 : index
    %c0_27 = arith.constant 0 : index
    %50 = tpu.strided_load %arg15[%c0_26, %c1, %c0_27] {strides = array<i32: 1, 2, 1>} : memref<8x16x32xf32, #tpu.memory_space<vmem>>, vector<8x8x32xf32>
    %51 = arith.addf %49, %50 : vector<8x8x32xf32>
    %cst_28 = arith.constant 2.500000e-01 : f32
    %52 = vector.broadcast %cst_28 : f32 to vector<8x8x32xf32>
    %53 = arith.mulf %51, %52 : vector<8x8x32xf32>
    %54 = vector.shape_cast %53 : vector<8x8x32xf32> to vector<64x32xf32>
    %55 = arith.truncf %54 : vector<64x32xf32> to vector<64x32xbf16>
    %c0_29 = arith.constant 0 : index
    %c0_30 = arith.constant 0 : index
    %56 = vector.load %arg8[%c0_29, %c0_30] : memref<32x128xbf16, #tpu.memory_space<vmem>>, vector<32x128xbf16>
    %cst_31 = arith.constant dense<0.000000e+00> : vector<64x128xf32>
    %57 = tpu.matmul %55, %56, %cst_31 {dimension_numbers = #tpu.dot_dimension_numbers<[1], [0], [0], [1], [0, 0, 1, 1], [], []>} : vector<64x32xbf16>, vector<32x128xbf16>, vector<64x128xf32> -> vector<64x128xf32>
    %c0_32 = arith.constant 0 : index
    %c0_33 = arith.constant 0 : index
    %58 = vector.load %arg9[%c0_32, %c0_33] : memref<1x128xf32, #tpu.memory_space<vmem>>, vector<1x128xf32>
    %59 = vector.broadcast %58 : vector<1x128xf32> to vector<64x128xf32>
    %60 = arith.mulf %57, %59 : vector<64x128xf32>
    %c0_34 = arith.constant 0 : index
    %c0_35 = arith.constant 0 : index
    %61 = vector.load %arg10[%c0_34, %c0_35] : memref<1x128xf32, #tpu.memory_space<vmem>>, vector<1x128xf32>
    %62 = vector.broadcast %61 : vector<1x128xf32> to vector<64x128xf32>
    %63 = arith.addf %60, %62 : vector<64x128xf32>
    %64 = vector.shape_cast %1 : vector<16x16x64xf32> to vector<8x2x16x64xf32>
    %65 = vector.extract_strided_slice %64 {offsets = [0, 0, 0, 0], sizes = [8, 1, 16, 64], strides = [1, 1, 1, 1]} : vector<8x2x16x64xf32> to vector<8x1x16x64xf32>
    %66 = vector.shape_cast %65 : vector<8x1x16x64xf32> to vector<8x16x64xf32>
    %67 = vector.extract_strided_slice %64 {offsets = [0, 1, 0, 0], sizes = [8, 1, 16, 64], strides = [1, 1, 1, 1]} : vector<8x2x16x64xf32> to vector<8x1x16x64xf32>
    %68 = vector.shape_cast %67 : vector<8x1x16x64xf32> to vector<8x16x64xf32>
    %69 = arith.addf %66, %68 : vector<8x16x64xf32>
    %c0_36 = arith.constant 0 : index
    %c0_37 = arith.constant 0 : index
    %c0_38 = arith.constant 0 : index
    %70 = vector.load %arg16[%c0_36, %c0_37, %c0_38] : memref<8x16x64xf32, #tpu.memory_space<vmem>>, vector<8x16x64xf32>
    tpu.vector_store %arg16[%c0_36, %c0_37, %c0_38], %69 {strides = array<i32>} : memref<8x16x64xf32, #tpu.memory_space<vmem>>, vector<8x16x64xf32>,
    %c0_39 = arith.constant 0 : index
    %c0_40 = arith.constant 0 : index
    %c0_41 = arith.constant 0 : index
    %71 = tpu.strided_load %arg16[%c0_39, %c0_40, %c0_41] {strides = array<i32: 1, 2, 1>} : memref<8x16x64xf32, #tpu.memory_space<vmem>>, vector<8x8x64xf32>
    %c0_42 = arith.constant 0 : index
    %c1_43 = arith.constant 1 : index
    %c0_44 = arith.constant 0 : index
    %72 = tpu.strided_load %arg16[%c0_42, %c1_43, %c0_44] {strides = array<i32: 1, 2, 1>} : memref<8x16x64xf32, #tpu.memory_space<vmem>>, vector<8x8x64xf32>
    %73 = arith.addf %71, %72 : vector<8x8x64xf32>
    %cst_45 = arith.constant 2.500000e-01 : f32
    %74 = vector.broadcast %cst_45 : f32 to vector<8x8x64xf32>
    %75 = arith.mulf %73, %74 : vector<8x8x64xf32>
    %76 = vector.shape_cast %75 : vector<8x8x64xf32> to vector<64x64xf32>
    %77 = arith.truncf %76 : vector<64x64xf32> to vector<64x64xbf16>
    %c0_46 = arith.constant 0 : index
    %c0_47 = arith.constant 0 : index
    %78 = vector.load %arg11[%c0_46, %c0_47] : memref<64x128xbf16, #tpu.memory_space<vmem>>, vector<64x128xbf16>
    %cst_48 = arith.constant dense<0.000000e+00> : vector<64x128xf32>
    %79 = tpu.matmul %77, %78, %cst_48 {dimension_numbers = #tpu.dot_dimension_numbers<[1], [0], [0], [1], [0, 0, 1, 1], [], []>} : vector<64x64xbf16>, vector<64x128xbf16>, vector<64x128xf32> -> vector<64x128xf32>
    %c0_49 = arith.constant 0 : index
    %c0_50 = arith.constant 0 : index
    %80 = vector.load %arg12[%c0_49, %c0_50] : memref<1x128xf32, #tpu.memory_space<vmem>>, vector<1x128xf32>
    %81 = vector.broadcast %80 : vector<1x128xf32> to vector<64x128xf32>
    %82 = arith.mulf %79, %81 : vector<64x128xf32>
    %c0_51 = arith.constant 0 : index
    %c0_52 = arith.constant 0 : index
    %83 = vector.load %arg13[%c0_51, %c0_52] : memref<1x128xf32, #tpu.memory_space<vmem>>, vector<1x128xf32>
    %84 = vector.broadcast %83 : vector<1x128xf32> to vector<64x128xf32>
    %85 = arith.addf %82, %84 : vector<64x128xf32>
    %86 = arith.addf %63, %85 : vector<64x128xf32>
    %cst_53 = arith.constant 0.000000e+00 : f32
    %87 = vector.broadcast %cst_53 : f32 to vector<64x128xf32>
    %88 = arith.maximumf %86, %87 : vector<64x128xf32>
    %89 = vector.shape_cast %88 : vector<64x128xf32> to vector<8x8x128xf32>
    %c0_54 = arith.constant 0 : index
    %c0_55 = arith.constant 0 : index
    %c0_56 = arith.constant 0 : index
    %c0_57 = arith.constant 0 : index
    %90 = vector.load %arg14[%c0_54, %c0_55, %c0_56, %c0_57] : memref<1x8x8x128xf32, #tpu.memory_space<vmem>>, vector<1x8x8x128xf32>
    %91 = vector.shape_cast %90 : vector<1x8x8x128xf32> to vector<8x8x128xf32>
    %92 = vector.shape_cast %89 : vector<8x8x128xf32> to vector<1x8x8x128xf32>
    tpu.vector_store %arg14[%c0_54, %c0_55, %c0_56, %c0_57], %92 {strides = array<i32>} : memref<1x8x8x128xf32, #tpu.memory_space<vmem>>, vector<1x8x8x128xf32>,
    return
  }
  func.func @transform_0(%arg0: i32) -> (i32, i32, i32, i32) {
    %c0_i32 = arith.constant 0 : i32
    %c0_i32_0 = arith.constant 0 : i32
    %c0_i32_1 = arith.constant 0 : i32
    %c0_i32_2 = arith.constant 0 : i32
    return %arg0, %c0_i32, %c0_i32_0, %c0_i32_1 : i32, i32, i32, i32
  }
  func.func @transform_1(%arg0: i32) -> (i32, i32) {
    %c0_i32 = arith.constant 0 : i32
    %c0_i32_0 = arith.constant 0 : i32
    %c0_i32_1 = arith.constant 0 : i32
    return %c0_i32, %c0_i32_0 : i32, i32
  }
  func.func @transform_2(%arg0: i32) -> (i32, i32) {
    %c0_i32 = arith.constant 0 : i32
    %c0_i32_0 = arith.constant 0 : i32
    %c0_i32_1 = arith.constant 0 : i32
    return %c0_i32, %c0_i32_0 : i32, i32
  }
  func.func @transform_3(%arg0: i32) -> (i32, i32) {
    %c0_i32 = arith.constant 0 : i32
    %c0_i32_0 = arith.constant 0 : i32
    %c0_i32_1 = arith.constant 0 : i32
    return %c0_i32, %c0_i32_0 : i32, i32
  }
  func.func @transform_4(%arg0: i32) -> (i32, i32) {
    %c0_i32 = arith.constant 0 : i32
    %c0_i32_0 = arith.constant 0 : i32
    %c0_i32_1 = arith.constant 0 : i32
    return %c0_i32, %c0_i32_0 : i32, i32
  }
  func.func @transform_5(%arg0: i32) -> (i32, i32) {
    %c0_i32 = arith.constant 0 : i32
    %c0_i32_0 = arith.constant 0 : i32
    %c0_i32_1 = arith.constant 0 : i32
    return %c0_i32, %c0_i32_0 : i32, i32
  }
  func.func @transform_6(%arg0: i32) -> (i32, i32) {
    %c0_i32 = arith.constant 0 : i32
    %c0_i32_0 = arith.constant 0 : i32
    %c0_i32_1 = arith.constant 0 : i32
    return %c0_i32, %c0_i32_0 : i32, i32
  }
  func.func @transform_7(%arg0: i32) -> (i32, i32) {
    %c0_i32 = arith.constant 0 : i32
    %c0_i32_0 = arith.constant 0 : i32
    %c0_i32_1 = arith.constant 0 : i32
    return %c0_i32, %c0_i32_0 : i32, i32
  }
  func.func @transform_8(%arg0: i32) -> (i32, i32) {
    %c0_i32 = arith.constant 0 : i32
    %c0_i32_0 = arith.constant 0 : i32
    %c0_i32_1 = arith.constant 0 : i32
    return %c0_i32, %c0_i32_0 : i32, i32
  }
  func.func @transform_9(%arg0: i32) -> (i32, i32) {
    %c0_i32 = arith.constant 0 : i32
    %c0_i32_0 = arith.constant 0 : i32
    %c0_i32_1 = arith.constant 0 : i32
    return %c0_i32, %c0_i32_0 : i32, i32
  }
  func.func @transform_10(%arg0: i32) -> (i32, i32) {
    %c0_i32 = arith.constant 0 : i32
    %c0_i32_0 = arith.constant 0 : i32
    %c0_i32_1 = arith.constant 0 : i32
    return %c0_i32, %c0_i32_0 : i32, i32
  }
  func.func @transform_11(%arg0: i32) -> (i32, i32) {
    %c0_i32 = arith.constant 0 : i32
    %c0_i32_0 = arith.constant 0 : i32
    %c0_i32_1 = arith.constant 0 : i32
    return %c0_i32, %c0_i32_0 : i32, i32
  }
  func.func @transform_12(%arg0: i32) -> (i32, i32) {
    %c0_i32 = arith.constant 0 : i32
    %c0_i32_0 = arith.constant 0 : i32
    %c0_i32_1 = arith.constant 0 : i32
    return %c0_i32, %c0_i32_0 : i32, i32
  }
  func.func @transform_13(%arg0: i32) -> (i32, i32, i32, i32) {
    %c0_i32 = arith.constant 0 : i32
    %c0_i32_0 = arith.constant 0 : i32
    %c0_i32_1 = arith.constant 0 : i32
    %c0_i32_2 = arith.constant 0 : i32
    return %arg0, %c0_i32, %c0_i32_0, %c0_i32_1 : i32, i32, i32, i32
  }
}

</mosaic_0001>

<llo_original>
// kernel: tpu_custom_call.1
$region0: #{tpu_custom_call.1}
  #allocation0 [shape = 'u32[]', space=smem, size = 0x4, offset = 0x4, fixed_abs, tag = 'smem constant byte address 0x4 - core index']
  #allocation1 [shape = 'u32[72,128]{1,0:T(1,128)}', space=vmem, size = 0x9000, scoped, tag = 'internal scratch']
  #allocation2 [shape = 'f32[8,16,32]{2,1,0:T(8,128)}', space=vmem, size = 0x10000, scoped, tag = 'scratch operand']
  #allocation3 [shape = 'f32[8,16,64]{2,1,0:T(8,128)}', space=vmem, size = 0x10000, scoped, tag = 'scratch operand']
  %s0 = inlined_call_operand.hbm [shape: f32[2,16,16,64], index: 0, kind: input, shape index: {}]
  %s1 = inlined_call_operand.vmem [shape: bf16[64,32], index: 1, kind: input, shape index: {}]
  %s2 = inlined_call_operand.vmem [shape: f32[1,32], index: 2, kind: input, shape index: {}]
  %s3 = inlined_call_operand.vmem [shape: f32[1,32], index: 3, kind: input, shape index: {}]
  %s4 = inlined_call_operand.vmem [shape: bf16[288,32], index: 4, kind: input, shape index: {}]
  %s5 = inlined_call_operand.vmem [shape: f32[1,32], index: 5, kind: input, shape index: {}]
  %s6 = inlined_call_operand.vmem [shape: f32[1,32], index: 6, kind: input, shape index: {}]
  %s7 = inlined_call_operand.vmem [shape: bf16[32,128], index: 7, kind: input, shape index: {}]
  %s8 = inlined_call_operand.vmem [shape: f32[1,128], index: 8, kind: input, shape index: {}]
  %s9 = inlined_call_operand.vmem [shape: f32[1,128], index: 9, kind: input, shape index: {}]
  %s10 = inlined_call_operand.vmem [shape: bf16[64,128], index: 10, kind: input, shape index: {}]
  %s11 = inlined_call_operand.vmem [shape: f32[1,128], index: 11, kind: input, shape index: {}]
  %s12 = inlined_call_operand.vmem [shape: f32[1,128], index: 12, kind: input, shape index: {}]
  %s13 = inlined_call_operand.hbm [shape: f32[2,8,8,128], index: 13, kind: output, shape index: {}]
  %s14 = sld [smem:[#allocation0]]
  $region89: #{tpu_custom_call.1} parent=0
    _
  %s16 = ssub.s32 1, %s14
  %s17 = scalar_select 0, %s16, %s14
  $region1: #{tpu_custom_call.1} parent=0
    #allocation4 [shape = 'u8[262144]{0}', space=vmem, size = 0x40000, scoped, tag = 'input window, operand 0']
    #allocation5 [shape = 's32[2]{0}', space=sflag, size = 0x8, scoped, tag = 'scoped memory for tpu_custom_call.1']
    #allocation6 [shape = 's32[2]{0}', space=sflag, size = 0x8, scoped, tag = 'scoped memory for tpu_custom_call.1']
    #allocation7 [shape = 'u8[65536]{0}', space=vmem, size = 0x10000, scoped, tag = 'output window, operand 0']
    %18 = vsyncpa [#allocation5], 0
    %s19 = scalar_lea.sflag [#allocation5], 1
    %20 = vsyncpa %s19, 0
    %21 = vsyncpa [#allocation6], 0
    %s22 = scalar_lea.sflag [#allocation6], 1
    %23 = vsyncpa %s22, 0
    loop: start=0, step=1, limit=4
    $region2: #{tpu_custom_call.1} parent=1 // loop_pre_header
      _
    $region3: #{tpu_custom_call.1} parent=1 // loop_header
      %s25 = sphi 0, %s29
      %p26 = scmp.ge.s32.totalorder %s25, 4
      %s35 = sphi 0, %s37
      %s38 = sphi 0, %s35
      %s39 = sphi 0, %s38
      %s55 = sphi 0, %s39
      %s59 = sphi 0, %s59
      %s61 = sphi 0, %s59
      %s62 = sphi 0, %s61
      %s76 = sphi 0, %s62
      %s80 = sphi 0, %s80
      %s82 = sphi 0, %s80
      %s83 = sphi 0, %s82
      %s97 = sphi 0, %s83
      %s101 = sphi 0, %s101
      %s103 = sphi 0, %s101
      %s104 = sphi 0, %s103
      %s118 = sphi 0, %s104
      %s122 = sphi 0, %s122
      %s124 = sphi 0, %s122
      %s125 = sphi 0, %s124
      %s139 = sphi 0, %s125
      %s143 = sphi 0, %s143
      %s145 = sphi 0, %s143
      %s146 = sphi 0, %s145
      %s160 = sphi 0, %s146
      %s164 = sphi 0, %s164
      %s166 = sphi 0, %s164
      %s167 = sphi 0, %s166
      %s181 = sphi 0, %s167
      %s185 = sphi 0, %s185
      %s187 = sphi 0, %s185
      %s188 = sphi 0, %s187
      %s202 = sphi 0, %s188
      %s206 = sphi 0, %s206
      %s208 = sphi 0, %s206
      %s209 = sphi 0, %s208
      %s223 = sphi 0, %s209
      %s227 = sphi 0, %s227
      %s229 = sphi 0, %s227
      %s230 = sphi 0, %s229
      %s244 = sphi 0, %s230
      %s248 = sphi 0, %s248
      %s250 = sphi 0, %s248
      %s251 = sphi 0, %s250
      %s265 = sphi 0, %s251
      %s269 = sphi 0, %s269
      %s271 = sphi 0, %s269
      %s272 = sphi 0, %s271
      %s286 = sphi 0, %s272
      %s290 = sphi 0, %s290
      %s292 = sphi 0, %s290
      %s293 = sphi 0, %s292
      %s307 = sphi 0, %s293
      %s313 = sphi 0, %s315
      %s316 = sphi 0, %s313
      %s317 = sphi 0, %s316
      %s333 = sphi 0, %s317
    $region4: #{tpu_custom_call.1} parent=1 // loop_header_branch
      %28 = sbr.rel (%p26) target = $region8
    $region5: #{tpu_custom_call.1} parent=1 // loop_body
      %s30 = ssub.s32 %s25, 1
      %s31 = ssub.s32 %s25, 2
      %s32 = sadd.s32 %s25, 1
      %s33 = ssub.s32 %s25, %s32
      %p34 = scmp.eq.s32.totalorder %s33, 0
      %s36 = sadd.s32 %s35, 1
      %s37 = scalar_select %p34, %s35, %s36
      %p40 = pneg %p34
      %p41 = scmp.eq.s32.totalorder %s25, 1
      %p42 = por %p40, %p41
      %p43 = scmp.ne.s32.totalorder %s35, %s38
      %p44 = scmp.eq.s32.totalorder %s25, 0
      %p45 = por %p43, %p44
      %p46 = scmp.ne.s32.totalorder %s35, %s38
      %p47 = scmp.eq.s32.totalorder %s30, 1
      %p48 = por %p46, %p47
      %p49 = scmp.ne.s32.totalorder %s38, %s39
      %p50 = scmp.eq.s32.totalorder %s30, 0
      %p51 = por %p49, %p50
      %p52 = scmp.ne.s32.totalorder %s38, %s39
      %p53 = scmp.eq.s32.totalorder %s31, 1
      %p54 = por %p52, %p53
      %p56 = scmp.ne.s32.totalorder %s39, %s55
      %p57 = scmp.eq.s32.totalorder %s31, 0
      %p58 = por %p56, %p57
      %s60 = sadd.s32 %s59, 1
      %p63 = scmp.eq.s32.totalorder %s25, 1
      %p64 = scmp.ne.s32.totalorder %s59, %s61
      %p65 = scmp.eq.s32.totalorder %s25, 0
      %p66 = por %p64, %p65
      %p67 = scmp.ne.s32.totalorder %s59, %s61
      %p68 = scmp.eq.s32.totalorder %s30, 1
      %p69 = por %p67, %p68
      %p70 = scmp.ne.s32.totalorder %s61, %s62
      %p71 = scmp.eq.s32.totalorder %s30, 0
      %p72 = por %p70, %p71
      %p73 = scmp.ne.s32.totalorder %s61, %s62
      %p74 = scmp.eq.s32.totalorder %s31, 1
      %p75 = por %p73, %p74
      %p77 = scmp.ne.s32.totalorder %s62, %s76
      %p78 = scmp.eq.s32.totalorder %s31, 0
      %p79 = por %p77, %p78
      %s81 = sadd.s32 %s80, 1
      %p84 = scmp.eq.s32.totalorder %s25, 1
      %p85 = scmp.ne.s32.totalorder %s80, %s82
      %p86 = scmp.eq.s32.totalorder %s25, 0
      %p87 = por %p85, %p86
      %p88 = scmp.ne.s32.totalorder %s80, %s82
      %p89 = scmp.eq.s32.totalorder %s30, 1
      %p90 = por %p88, %p89
      %p91 = scmp.ne.s32.totalorder %s82, %s83
      %p92 = scmp.eq.s32.totalorder %s30, 0
      %p93 = por %p91, %p92
      %p94 = scmp.ne.s32.totalorder %s82, %s83
      %p95 = scmp.eq.s32.totalorder %s31, 1
      %p96 = por %p94, %p95
      %p98 = scmp.ne.s32.totalorder %s83, %s97
      %p99 = scmp.eq.s32.totalorder %s31, 0
      %p100 = por %p98, %p99
      %s102 = sadd.s32 %s101, 1
      %p105 = scmp.eq.s32.totalorder %s25, 1
      %p106 = scmp.ne.s32.totalorder %s101, %s103
      %p107 = scmp.eq.s32.totalorder %s25, 0
      %p108 = por %p106, %p107
      %p109 = scmp.ne.s32.totalorder %s101, %s103
      %p110 = scmp.eq.s32.totalorder %s30, 1
      %p111 = por %p109, %p110
      %p112 = scmp.ne.s32.totalorder %s103, %s104
      %p113 = scmp.eq.s32.totalorder %s30, 0
      %p114 = por %p112, %p113
      %p115 = scmp.ne.s32.totalorder %s103, %s104
      %p116 = scmp.eq.s32.totalorder %s31, 1
      %p117 = por %p115, %p116
      %p119 = scmp.ne.s32.totalorder %s104, %s118
      %p120 = scmp.eq.s32.totalorder %s31, 0
      %p121 = por %p119, %p120
      %s123 = sadd.s32 %s122, 1
      %p126 = scmp.eq.s32.totalorder %s25, 1
      %p127 = scmp.ne.s32.totalorder %s122, %s124
      %p128 = scmp.eq.s32.totalorder %s25, 0
      %p129 = por %p127, %p128
      %p130 = scmp.ne.s32.totalorder %s122, %s124
      %p131 = scmp.eq.s32.totalorder %s30, 1
      %p132 = por %p130, %p131
      %p133 = scmp.ne.s32.totalorder %s124, %s125
      %p134 = scmp.eq.s32.totalorder %s30, 0
      %p135 = por %p133, %p134
      %p136 = scmp.ne.s32.totalorder %s124, %s125
      %p137 = scmp.eq.s32.totalorder %s31, 1
      %p138 = por %p136, %p137
      %p140 = scmp.ne.s32.totalorder %s125, %s139
      %p141 = scmp.eq.s32.totalorder %s31, 0
      %p142 = por %p140, %p141
      %s144 = sadd.s32 %s143, 1
      %p147 = scmp.eq.s32.totalorder %s25, 1
      %p148 = scmp.ne.s32.totalorder %s143, %s145
      %p149 = scmp.eq.s32.totalorder %s25, 0
      %p150 = por %p148, %p149
      %p151 = scmp.ne.s32.totalorder %s143, %s145
      %p152 = scmp.eq.s32.totalorder %s30, 1
      %p153 = por %p151, %p152
      %p154 = scmp.ne.s32.totalorder %s145, %s146
      %p155 = scmp.eq.s32.totalorder %s30, 0
      %p156 = por %p154, %p155
      %p157 = scmp.ne.s32.totalorder %s145, %s146
      %p158 = scmp.eq.s32.totalorder %s31, 1
      %p159 = por %p157, %p158
      %p161 = scmp.ne.s32.totalorder %s146, %s160
      %p162 = scmp.eq.s32.totalorder %s31, 0
      %p163 = por %p161, %p162
      %s165 = sadd.s32 %s164, 1
      %p168 = scmp.eq.s32.totalorder %s25, 1
      %p169 = scmp.ne.s32.totalorder %s164, %s166
      %p170 = scmp.eq.s32.totalorder %s25, 0
      %p171 = por %p169, %p170
      %p172 = scmp.ne.s32.totalorder %s164, %s166
      %p173 = scmp.eq.s32.totalorder %s30, 1
      %p174 = por %p172, %p173
      %p175 = scmp.ne.s32.totalorder %s166, %s167
      %p176 = scmp.eq.s32.totalorder %s30, 0
      %p177 = por %p175, %p176
      %p178 = scmp.ne.s32.totalorder %s166, %s167
      %p179 = scmp.eq.s32.totalorder %s31, 1
      %p180 = por %p178, %p179
      %p182 = scmp.ne.s32.totalorder %s167, %s181
      %p183 = scmp.eq.s32.totalorder %s31, 0
      %p184 = por %p182, %p183
      %s186 = sadd.s32 %s185, 1
      %p189 = scmp.eq.s32.totalorder %s25, 1
      %p190 = scmp.ne.s32.totalorder %s185, %s187
      %p191 = scmp.eq.s32.totalorder %s25, 0
      %p192 = por %p190, %p191
      %p193 = scmp.ne.s32.totalorder %s185, %s187
      %p194 = scmp.eq.s32.totalorder %s30, 1
      %p195 = por %p193, %p194
      %p196 = scmp.ne.s32.totalorder %s187, %s188
      %p197 = scmp.eq.s32.totalorder %s30, 0
      %p198 = por %p196, %p197
      %p199 = scmp.ne.s32.totalorder %s187, %s188
      %p200 = scmp.eq.s32.totalorder %s31, 1
      %p201 = por %p199, %p200
      %p203 = scmp.ne.s32.totalorder %s188, %s202
      %p204 = scmp.eq.s32.totalorder %s31, 0
      %p205 = por %p203, %p204
      %s207 = sadd.s32 %s206, 1
      %p210 = scmp.eq.s32.totalorder %s25, 1
      %p211 = scmp.ne.s32.totalorder %s206, %s208
      %p212 = scmp.eq.s32.totalorder %s25, 0
      %p213 = por %p211, %p212
      %p214 = scmp.ne.s32.totalorder %s206, %s208
      %p215 = scmp.eq.s32.totalorder %s30, 1
      %p216 = por %p214, %p215
      %p217 = scmp.ne.s32.totalorder %s208, %s209
      %p218 = scmp.eq.s32.totalorder %s30, 0
      %p219 = por %p217, %p218
      %p220 = scmp.ne.s32.totalorder %s208, %s209
      %p221 = scmp.eq.s32.totalorder %s31, 1
      %p222 = por %p220, %p221
      %p224 = scmp.ne.s32.totalorder %s209, %s223
      %p225 = scmp.eq.s32.totalorder %s31, 0
      %p226 = por %p224, %p225
      %s228 = sadd.s32 %s227, 1
      %p231 = scmp.eq.s32.totalorder %s25, 1
      %p232 = scmp.ne.s32.totalorder %s227, %s229
      %p233 = scmp.eq.s32.totalorder %s25, 0
      %p234 = por %p232, %p233
      %p235 = scmp.ne.s32.totalorder %s227, %s229
      %p236 = scmp.eq.s32.totalorder %s30, 1
      %p237 = por %p235, %p236
      %p238 = scmp.ne.s32.totalorder %s229, %s230
      %p239 = scmp.eq.s32.totalorder %s30, 0
      %p240 = por %p238, %p239
      %p241 = scmp.ne.s32.totalorder %s229, %s230
      %p242 = scmp.eq.s32.totalorder %s31, 1
      %p243 = por %p241, %p242
      %p245 = scmp.ne.s32.totalorder %s230, %s244
      %p246 = scmp.eq.s32.totalorder %s31, 0
      %p247 = por %p245, %p246
      %s249 = sadd.s32 %s248, 1
      %p252 = scmp.eq.s32.totalorder %s25, 1
      %p253 = scmp.ne.s32.totalorder %s248, %s250
      %p254 = scmp.eq.s32.totalorder %s25, 0
      %p255 = por %p253, %p254
      %p256 = scmp.ne.s32.totalorder %s248, %s250
      %p257 = scmp.eq.s32.totalorder %s30, 1
      %p258 = por %p256, %p257
      %p259 = scmp.ne.s32.totalorder %s250, %s251
      %p260 = scmp.eq.s32.totalorder %s30, 0
      %p261 = por %p259, %p260
      %p262 = scmp.ne.s32.totalorder %s250, %s251
      %p263 = scmp.eq.s32.totalorder %s31, 1
      %p264 = por %p262, %p263
      %p266 = scmp.ne.s32.totalorder %s251, %s265
      %p267 = scmp.eq.s32.totalorder %s31, 0
      %p268 = por %p266, %p267
      %s270 = sadd.s32 %s269, 1
      %p273 = scmp.eq.s32.totalorder %s25, 1
      %p274 = scmp.ne.s32.totalorder %s269, %s271
      %p275 = scmp.eq.s32.totalorder %s25, 0
      %p276 = por %p274, %p275
      %p277 = scmp.ne.s32.totalorder %s269, %s271
      %p278 = scmp.eq.s32.totalorder %s30, 1
      %p279 = por %p277, %p278
      %p280 = scmp.ne.s32.totalorder %s271, %s272
      %p281 = scmp.eq.s32.totalorder %s30, 0
      %p282 = por %p280, %p281
      %p283 = scmp.ne.s32.totalorder %s271, %s272
      %p284 = scmp.eq.s32.totalorder %s31, 1
      %p285 = por %p283, %p284
      %p287 = scmp.ne.s32.totalorder %s272, %s286
      %p288 = scmp.eq.s32.totalorder %s31, 0
      %p289 = por %p287, %p288
      %s291 = sadd.s32 %s290, 1
      %p294 = scmp.eq.s32.totalorder %s25, 1
      %p295 = scmp.ne.s32.totalorder %s290, %s292
      %p296 = scmp.eq.s32.totalorder %s25, 0
      %p297 = por %p295, %p296
      %p298 = scmp.ne.s32.totalorder %s290, %s292
      %p299 = scmp.eq.s32.totalorder %s30, 1
      %p300 = por %p298, %p299
      %p301 = scmp.ne.s32.totalorder %s292, %s293
      %p302 = scmp.eq.s32.totalorder %s30, 0
      %p303 = por %p301, %p302
      %p304 = scmp.ne.s32.totalorder %s292, %s293
      %p305 = scmp.eq.s32.totalorder %s31, 1
      %p306 = por %p304, %p305
      %p308 = scmp.ne.s32.totalorder %s293, %s307
      %p309 = scmp.eq.s32.totalorder %s31, 0
      %p310 = por %p308, %p309
      %s311 = ssub.s32 %s25, %s32
      %p312 = scmp.eq.s32.totalorder %s311, 0
      %s314 = sadd.s32 %s313, 1
      %s315 = scalar_select %p312, %s313, %s314
      %p318 = pneg %p312
      %p319 = scmp.eq.s32.totalorder %s25, 1
      %p320 = por %p318, %p319
      %p321 = scmp.ne.s32.totalorder %s313, %s316
      %p322 = scmp.eq.s32.totalorder %s25, 0
      %p323 = por %p321, %p322
      %p324 = scmp.ne.s32.totalorder %s313, %s316
      %p325 = scmp.eq.s32.totalorder %s30, 1
      %p326 = por %p324, %p325
      %p327 = scmp.ne.s32.totalorder %s316, %s317
      %p328 = scmp.eq.s32.totalorder %s30, 0
      %p329 = por %p327, %p328
      %p330 = scmp.ne.s32.totalorder %s316, %s317
      %p331 = scmp.eq.s32.totalorder %s31, 1
      %p332 = por %p330, %p331
      %p334 = scmp.ne.s32.totalorder %s317, %s333
      %p335 = scmp.eq.s32.totalorder %s31, 0
      %p336 = por %p334, %p335
      %p337 = scmp.le.s32.totalorder 1, %s25
      %p338 = scmp.lt.s32.totalorder %s25, 3
      %p339 = pnand %p337, %p338
      %p340 = pneg %p339
      // Predicated region
      $region9: #{tpu_custom_call.1} parent=5 // pred_check
        _
      $region10: #{tpu_custom_call.1} parent=5 // pred_check_branch
        %342 = sbr.rel (%p339) target = $region12
      $region11: #{tpu_custom_call.1} parent=5 // pred_region
        %s343 = ssub.s32 %s25, 1
        // Predicated region
        $region13: #{tpu_custom_call.1} parent=11 // pred_check
          %p344 = pneg %p72
        $region14: #{tpu_custom_call.1} parent=11 // pred_check_branch
          %346 = sbr.rel (%p344) target = $region16
        $region15: #{tpu_custom_call.1} parent=11 // pred_region
          _
        $region16: #{tpu_custom_call.1} parent=11 // pred_fallthru
          _
        // Predicated region
        $region17: #{tpu_custom_call.1} parent=11 // pred_check
          %p347 = pneg %p93
        $region18: #{tpu_custom_call.1} parent=11 // pred_check_branch
          %349 = sbr.rel (%p347) target = $region20
        $region19: #{tpu_custom_call.1} parent=11 // pred_region
          _
        $region20: #{tpu_custom_call.1} parent=11 // pred_fallthru
          _
        // Predicated region
        $region21: #{tpu_custom_call.1} parent=11 // pred_check
          %p350 = pneg %p114
        $region22: #{tpu_custom_call.1} parent=11 // pred_check_branch
          %352 = sbr.rel (%p350) target = $region24
        $region23: #{tpu_custom_call.1} parent=11 // pred_region
          _
        $region24: #{tpu_custom_call.1} parent=11 // pred_fallthru
          _
        // Predicated region
        $region25: #{tpu_custom_call.1} parent=11 // pred_check
          %p353 = pneg %p135
        $region26: #{tpu_custom_call.1} parent=11 // pred_check_branch
          %355 = sbr.rel (%p353) target = $region28
        $region27: #{tpu_custom_call.1} parent=11 // pred_region
          _
        $region28: #{tpu_custom_call.1} parent=11 // pred_fallthru
          _
        // Predicated region
        $region29: #{tpu_custom_call.1} parent=11 // pred_check
          %p356 = pneg %p156
        $region30: #{tpu_custom_call.1} parent=11 // pred_check_branch
          %358 = sbr.rel (%p356) target = $region32
        $region31: #{tpu_custom_call.1} parent=11 // pred_region
          _
        $region32: #{tpu_custom_call.1} parent=11 // pred_fallthru
          _
        // Predicated region
        $region33: #{tpu_custom_call.1} parent=11 // pred_check
          %p359 = pneg %p177
        $region34: #{tpu_custom_call.1} parent=11 // pred_check_branch
          %361 = sbr.rel (%p359) target = $region36
        $region35: #{tpu_custom_call.1} parent=11 // pred_region
          _
        $region36: #{tpu_custom_call.1} parent=11 // pred_fallthru
          _
        // Predicated region
        $region37: #{tpu_custom_call.1} parent=11 // pred_check
          %p362 = pneg %p198
        $region38: #{tpu_custom_call.1} parent=11 // pred_check_branch
          %364 = sbr.rel (%p362) target = $region40
        $region39: #{tpu_custom_call.1} parent=11 // pred_region
          _
        $region40: #{tpu_custom_call.1} parent=11 // pred_fallthru
          _
        // Predicated region
        $region41: #{tpu_custom_call.1} parent=11 // pred_check
          %p365 = pneg %p219
        $region42: #{tpu_custom_call.1} parent=11 // pred_check_branch
          %367 = sbr.rel (%p365) target = $region44
        $region43: #{tpu_custom_call.1} parent=11 // pred_region
          _
        $region44: #{tpu_custom_call.1} parent=11 // pred_fallthru
          _
        // Predicated region
        $region45: #{tpu_custom_call.1} parent=11 // pred_check
          %p368 = pneg %p240
        $region46: #{tpu_custom_call.1} parent=11 // pred_check_branch
          %370 = sbr.rel (%p368) target = $region48
        $region47: #{tpu_custom_call.1} parent=11 // pred_region
          _
        $region48: #{tpu_custom_call.1} parent=11 // pred_fallthru
          _
        // Predicated region
        $region49: #{tpu_custom_call.1} parent=11 // pred_check
          %p371 = pneg %p261
        $region50: #{tpu_custom_call.1} parent=11 // pred_check_branch
          %373 = sbr.rel (%p371) target = $region52
        $region51: #{tpu_custom_call.1} parent=11 // pred_region
          _
        $region52: #{tpu_custom_call.1} parent=11 // pred_fallthru
          _
        // Predicated region
        $region53: #{tpu_custom_call.1} parent=11 // pred_check
          %p374 = pneg %p282
        $region54: #{tpu_custom_call.1} parent=11 // pred_check_branch
          %376 = sbr.rel (%p374) target = $region56
        $region55: #{tpu_custom_call.1} parent=11 // pred_region
          _
        $region56: #{tpu_custom_call.1} parent=11 // pred_fallthru
          _
        // Predicated region
        $region57: #{tpu_custom_call.1} parent=11 // pred_check
          %p377 = pneg %p303
        $region58: #{tpu_custom_call.1} parent=11 // pred_check_branch
          %379 = sbr.rel (%p377) target = $region60
        $region59: #{tpu_custom_call.1} parent=11 // pred_region
          _
        $region60: #{tpu_custom_call.1} parent=11 // pred_fallthru
          _
      $region12: #{tpu_custom_call.1} parent=5 // pred_fallthru
        _
      %p380 = scmp.lt.s32.totalorder %s25, 2
      // Predicated region
      $region61: #{tpu_custom_call.1} parent=5 // pred_check
        %p381 = pneg %p380
      $region62: #{tpu_custom_call.1} parent=5 // pred_check_branch
        %383 = sbr.rel (%p381) target = $region64
      $region63: #{tpu_custom_call.1} parent=5 // pred_region
        // Predicated region
        $region65: #{tpu_custom_call.1} parent=63 // pred_check
          %p384 = pneg %p45
        $region66: #{tpu_custom_call.1} parent=63 // pred_check_branch
          %386 = sbr.rel (%p384) target = $region68
        $region67: #{tpu_custom_call.1} parent=63 // pred_region
          %s387 = sand.u32 %s35, 1
          %s388 = scalar_lea.sflag [#allocation5], %s387
          %s389 = sand.u32 %s35, 1
          %s390 = smul.addr %s389, 256
          %s391 = scalar_lea.vmem [#allocation4], %s390
          %393 = vsyncadd %s388, 0
          %s394 = smul.addr %s25, 32
          %s395 = smul.addr %s394, 8
          %s396 = scalar_lea.hbm %s0, %s395
          %s397 = sshll.u32 %s396, 4
          %s398 = int_to_ptr.hbm [resolvable:$true] %s397
          %s399 = sshll.u32 %s391, 4
          %s400 = int_to_ptr.vmem [resolvable:$true] %s399
          %405 = dma.hbm_to_vmem [thread:$0]  %s398, 4096, %s400, %s388, 128, 128, 8
        $region68: #{tpu_custom_call.1} parent=63 // pred_fallthru
          _
      $region64: #{tpu_custom_call.1} parent=5 // pred_fallthru
        _
      %p406 = scmp.le.s32.totalorder 1, %s25
      %p407 = scmp.lt.s32.totalorder %s25, 3
      %p408 = pnand %p406, %p407
      %p409 = pneg %p408
      // Predicated region
      $region69: #{tpu_custom_call.1} parent=5 // pred_check
        _
      $region70: #{tpu_custom_call.1} parent=5 // pred_check_branch
        %411 = sbr.rel (%p408) target = $region72
      $region71: #{tpu_custom_call.1} parent=5 // pred_region
        %s412 = ssub.s32 %s25, 1
        %s413 = sand.u32 %s38, 1
        %s414 = scalar_lea.sflag [#allocation5], %s413
        %s415 = sand.u32 %s38, 1
        %s416 = smul.addr %s415, 256
        %s417 = scalar_lea.vmem [#allocation4], %s416
        // Predicated region
        $region73: #{tpu_custom_call.1} parent=71 // pred_check
          %p418 = pneg %p51
        $region74: #{tpu_custom_call.1} parent=71 // pred_check_branch
          %420 = sbr.rel (%p418) target = $region76
        $region75: #{tpu_custom_call.1} parent=71 // pred_region
          %422 = dma.done %s414, 4096
        $region76: #{tpu_custom_call.1} parent=71 // pred_fallthru
          _
        %s423 = sand.u32 %s38, 1
        %s424 = scalar_lea.sflag [#allocation5], %s423
        %s425 = sand.u32 %s38, 1
        %s426 = smul.addr %s425, 256
        %s427 = scalar_lea.vmem [#allocation4], %s426
        %p428 = pneg %p51
        %p429 = pneg %p48
        %p430 = pneg %p72
        %p431 = pneg %p69
        %p432 = pneg %p93
        %p433 = pneg %p90
        %p434 = pneg %p114
        %p435 = pneg %p111
        %p436 = pneg %p135
        %p437 = pneg %p132
        %p438 = pneg %p156
        %p439 = pneg %p153
        %p440 = pneg %p177
        %p441 = pneg %p174
        %p442 = pneg %p198
        %p443 = pneg %p195
        %p444 = pneg %p219
        %p445 = pneg %p216
        %p446 = pneg %p240
        %p447 = pneg %p237
        %p448 = pneg %p261
        %p449 = pneg %p258
        %p450 = pneg %p282
        %p451 = pneg %p279
        %p452 = pneg %p303
        %p453 = pneg %p300
        %p454 = pneg %p329
        %p455 = pneg %p326
        %s456 = sand.u32 %s316, 1
        %s457 = scalar_lea.sflag [#allocation6], %s456
        %s458 = sand.u32 %s316, 1
        %s459 = smul.addr %s458, 64
        %s460 = scalar_lea.vmem [#allocation7], %s459
        %v462 = vld [vmem:[%s417] sm:$0xff]
        %v463 = vld [vmem:[%s417 + $0x8] sm:$0xff]
        %v464 = vld [vmem:[%s417 + $0x10] sm:$0xff]
        %v465 = vld [vmem:[%s417 + $0x18] sm:$0xff]
        %v466 = vld [vmem:[%s417 + $0x20] sm:$0xff]
        %v467 = vld [vmem:[%s417 + $0x28] sm:$0xff]
        %v468 = vld [vmem:[%s417 + $0x30] sm:$0xff]
        %v469 = vld [vmem:[%s417 + $0x38] sm:$0xff]
        %v470 = vld [vmem:[%s417 + $0x40] sm:$0xff]
        %v471 = vld [vmem:[%s417 + $0x48] sm:$0xff]
        %v472 = vld [vmem:[%s417 + $0x50] sm:$0xff]
        %v473 = vld [vmem:[%s417 + $0x58] sm:$0xff]
        %v474 = vld [vmem:[%s417 + $0x60] sm:$0xff]
        %v475 = vld [vmem:[%s417 + $0x68] sm:$0xff]
        %v476 = vld [vmem:[%s417 + $0x70] sm:$0xff]
        %v477 = vld [vmem:[%s417 + $0x78] sm:$0xff]
        %v478 = vld [vmem:[%s417 + $0x80] sm:$0xff]
        %v479 = vld [vmem:[%s417 + $0x88] sm:$0xff]
        %v480 = vld [vmem:[%s417 + $0x90] sm:$0xff]
        %v481 = vld [vmem:[%s417 + $0x98] sm:$0xff]
        %v482 = vld [vmem:[%s417 + $0xa0] sm:$0xff]
        %v483 = vld [vmem:[%s417 + $0xa8] sm:$0xff]
        %v484 = vld [vmem:[%s417 + $0xb0] sm:$0xff]
        %v485 = vld [vmem:[%s417 + $0xb8] sm:$0xff]
        %v486 = vld [vmem:[%s417 + $0xc0] sm:$0xff]
        %v487 = vld [vmem:[%s417 + $0xc8] sm:$0xff]
        %v488 = vld [vmem:[%s417 + $0xd0] sm:$0xff]
        %v489 = vld [vmem:[%s417 + $0xd8] sm:$0xff]
        %v490 = vld [vmem:[%s417 + $0xe0] sm:$0xff]
        %v491 = vld [vmem:[%s417 + $0xe8] sm:$0xff]
        %v492 = vld [vmem:[%s417 + $0xf0] sm:$0xff]
        %v493 = vld [vmem:[%s417 + $0xf8] sm:$0xff]
        %v494 = vpack.c.bf16 %v463, %v462
        %v495 = vpack.c.bf16 %v465, %v464
        %v496 = vpack.c.bf16 %v467, %v466
        %v497 = vpack.c.bf16 %v469, %v468
        %v498 = vpack.c.bf16 %v471, %v470
        %v499 = vpack.c.bf16 %v473, %v472
        %v500 = vpack.c.bf16 %v475, %v474
        %v501 = vpack.c.bf16 %v477, %v476
        %v502 = vpack.c.bf16 %v479, %v478
        %v503 = vpack.c.bf16 %v481, %v480
        %v504 = vpack.c.bf16 %v483, %v482
        %v505 = vpack.c.bf16 %v485, %v484
        %v506 = vpack.c.bf16 %v487, %v486
        %v507 = vpack.c.bf16 %v489, %v488
        %v508 = vpack.c.bf16 %v491, %v490
        %v509 = vpack.c.bf16 %v493, %v492
        %v510 = vld [vmem:[%s1] sm:$0xf]
        %v511 = vld [vmem:[%s1 + $0x4] sm:$0xf]
        %v512 = vld [vmem:[%s1 + $0x8] sm:$0xf]
        %v513 = vld [vmem:[%s1 + $0xc] sm:$0xf]
        %v514 = vld [vmem:[%s1 + $0x10] sm:$0xf]
        %v515 = vld [vmem:[%s1 + $0x14] sm:$0xf]
        %v516 = vld [vmem:[%s1 + $0x18] sm:$0xf]
        %v517 = vld [vmem:[%s1 + $0x1c] sm:$0xf]
        %v526 = vunpack.c.l.b16 %v510
        %v527 = vunpack.c.l.b16 %v511
        %v528 = vunpack.c.l.b16 %v512
        %v529 = vunpack.c.l.b16 %v513
        %v530 = vunpack.c.l.b16 %v514
        %v531 = vunpack.c.l.b16 %v515
        %v532 = vunpack.c.l.b16 %v516
        %v533 = vunpack.c.l.b16 %v517
        %v534 = vpack.c.b16 %v527, %v526
        %v535 = vpack.c.b16 %v529, %v528
        %v536 = vpack.c.b16 %v531, %v530
        %v537 = vpack.c.b16 %v533, %v532
        %vm542 = vcmask 523264
        %v544 = vsel %vm542, %v494, 0
        %v547 = vsel %vm542, %v495, 0
        %v550 = vsel %vm542, %v496, 0
        %v553 = vsel %vm542, %v497, 0
        %v556 = vsel %vm542, %v498, 0
        %v559 = vsel %vm542, %v499, 0
        %v562 = vsel %vm542, %v500, 0
        %v565 = vsel %vm542, %v501, 0
        %v568 = vsel %vm542, %v502, 0
        %v571 = vsel %vm542, %v503, 0
        %v574 = vsel %vm542, %v504, 0
        %v577 = vsel %vm542, %v505, 0
        %v580 = vsel %vm542, %v506, 0
        %v583 = vsel %vm542, %v507, 0
        %v586 = vsel %vm542, %v508, 0
        %v589 = vsel %vm542, %v509, 0
        %591 = vmatpush.bf16.msra.mxu0 0
        %592 = vmatpush.bf16.msra.mxu0 0
        %593 = vmatpush.bf16.msra.mxu0 0
        %594 = vmatpush.bf16.msra.mxu0 0
        %595 = vmatpush.bf16.msra.mxu0 %v537
        %596 = vmatpush.bf16.msra.mxu0 %v536
        %597 = vmatpush.bf16.msra.mxu0 %v535
        %598 = vmatpush.bf16.msra.mxu0 %v534
        %599 = vmatmul.bf16.gmra.mxu0 %v544
        %v600 = vpop.f32.mrf.mxu0
        %v601 = vadd.f32 0.0, %v600
        %v602 = vpop.f32.mrf.mxu0
        %v603 = vadd.f32 0.0, %v602
        %604 = vmatmul.bf16.gmra.mxu0 %v547
        %v605 = vpop.f32.mrf.mxu0
        %v606 = vadd.f32 0.0, %v605
        %v607 = vpop.f32.mrf.mxu0
        %v608 = vadd.f32 0.0, %v607
        %609 = vmatmul.bf16.gmra.mxu0 %v550
        %v610 = vpop.f32.mrf.mxu0
        %v611 = vadd.f32 0.0, %v610
        %v612 = vpop.f32.mrf.mxu0
        %v613 = vadd.f32 0.0, %v612
        %614 = vmatmul.bf16.gmra.mxu0 %v553
        %v615 = vpop.f32.mrf.mxu0
        %v616 = vadd.f32 0.0, %v615
        %v617 = vpop.f32.mrf.mxu0
        %v618 = vadd.f32 0.0, %v617
        %619 = vmatmul.bf16.gmra.mxu0 %v556
        %v620 = vpop.f32.mrf.mxu0
        %v621 = vadd.f32 0.0, %v620
        %v622 = vpop.f32.mrf.mxu0
        %v623 = vadd.f32 0.0, %v622
        %624 = vmatmul.bf16.gmra.mxu0 %v559
        %v625 = vpop.f32.mrf.mxu0
        %v626 = vadd.f32 0.0, %v625
        %v627 = vpop.f32.mrf.mxu0
        %v628 = vadd.f32 0.0, %v627
        %629 = vmatmul.bf16.gmra.mxu0 %v562
        %v630 = vpop.f32.mrf.mxu0
        %v631 = vadd.f32 0.0, %v630
        %v632 = vpop.f32.mrf.mxu0
        %v633 = vadd.f32 0.0, %v632
        %634 = vmatmul.bf16.gmra.mxu0 %v565
        %v635 = vpop.f32.mrf.mxu0
        %v636 = vadd.f32 0.0, %v635
        %v637 = vpop.f32.mrf.mxu0
        %v638 = vadd.f32 0.0, %v637
        %639 = vmatmul.bf16.gmra.mxu0 %v568
        %v640 = vpop.f32.mrf.mxu0
        %v641 = vadd.f32 0.0, %v640
        %v642 = vpop.f32.mrf.mxu0
        %v643 = vadd.f32 0.0, %v642
        %644 = vmatmul.bf16.gmra.mxu0 %v571
        %v645 = vpop.f32.mrf.mxu0
        %v646 = vadd.f32 0.0, %v645
        %v647 = vpop.f32.mrf.mxu0
        %v648 = vadd.f32 0.0, %v647
        %649 = vmatmul.bf16.gmra.mxu0 %v574
        %v650 = vpop.f32.mrf.mxu0
        %v651 = vadd.f32 0.0, %v650
        %v652 = vpop.f32.mrf.mxu0
        %v653 = vadd.f32 0.0, %v652
        %654 = vmatmul.bf16.gmra.mxu0 %v577
        %v655 = vpop.f32.mrf.mxu0
        %v656 = vadd.f32 0.0, %v655
        %v657 = vpop.f32.mrf.mxu0
        %v658 = vadd.f32 0.0, %v657
        %659 = vmatmul.bf16.gmra.mxu0 %v580
        %v660 = vpop.f32.mrf.mxu0
        %v661 = vadd.f32 0.0, %v660
        %v662 = vpop.f32.mrf.mxu0
        %v663 = vadd.f32 0.0, %v662
        %664 = vmatmul.bf16.gmra.mxu0 %v583
        %v665 = vpop.f32.mrf.mxu0
        %v666 = vadd.f32 0.0, %v665
        %v667 = vpop.f32.mrf.mxu0
        %v668 = vadd.f32 0.0, %v667
        %669 = vmatmul.bf16.gmra.mxu0 %v586
        %v670 = vpop.f32.mrf.mxu0
        %v671 = vadd.f32 0.0, %v670
        %v672 = vpop.f32.mrf.mxu0
        %v673 = vadd.f32 0.0, %v672
        %674 = vmatmul.bf16.gmra.mxu0 %v589
        %v675 = vpop.f32.mrf.mxu0
        %v676 = vadd.f32 0.0, %v675
        %v677 = vpop.f32.mrf.mxu0
        %v678 = vadd.f32 0.0, %v677
        %679 = vdwg.mxu0
        %v680 = vld [vmem:[%s2] sm:$0x1]
        %v682 = vperm.slane %v680, 0
        %v684 = vmul.f32 %v601, %v682
        %v685 = vmul.f32 %v603, %v682
        %v686 = vmul.f32 %v606, %v682
        %v687 = vmul.f32 %v608, %v682
        %v688 = vmul.f32 %v611, %v682
        %v689 = vmul.f32 %v613, %v682
        %v690 = vmul.f32 %v616, %v682
        %v691 = vmul.f32 %v618, %v682
        %v692 = vmul.f32 %v621, %v682
        %v693 = vmul.f32 %v623, %v682
        %v694 = vmul.f32 %v626, %v682
        %v695 = vmul.f32 %v628, %v682
        %v696 = vmul.f32 %v631, %v682
        %v697 = vmul.f32 %v633, %v682
        %v698 = vmul.f32 %v636, %v682
        %v699 = vmul.f32 %v638, %v682
        %v700 = vmul.f32 %v641, %v682
        %v701 = vmul.f32 %v643, %v682
        %v702 = vmul.f32 %v646, %v682
        %v703 = vmul.f32 %v648, %v682
        %v704 = vmul.f32 %v651, %v682
        %v705 = vmul.f32 %v653, %v682
        %v706 = vmul.f32 %v656, %v682
        %v707 = vmul.f32 %v658, %v682
        %v708 = vmul.f32 %v661, %v682
        %v709 = vmul.f32 %v663, %v682
        %v710 = vmul.f32 %v666, %v682
        %v711 = vmul.f32 %v668, %v682
        %v712 = vmul.f32 %v671, %v682
        %v713 = vmul.f32 %v673, %v682
        %v714 = vmul.f32 %v676, %v682
        %v715 = vmul.f32 %v678, %v682
        %v716 = vld [vmem:[%s3] sm:$0x1]
        %v718 = vperm.slane %v716, 0
        %v720 = vadd.f32 %v684, %v718
        %v721 = vadd.f32 %v685, %v718
        %v722 = vadd.f32 %v686, %v718
        %v723 = vadd.f32 %v687, %v718
        %v724 = vadd.f32 %v688, %v718
        %v725 = vadd.f32 %v689, %v718
        %v726 = vadd.f32 %v690, %v718
        %v727 = vadd.f32 %v691, %v718
        %v728 = vadd.f32 %v692, %v718
        %v729 = vadd.f32 %v693, %v718
        %v730 = vadd.f32 %v694, %v718
        %v731 = vadd.f32 %v695, %v718
        %v732 = vadd.f32 %v696, %v718
        %v733 = vadd.f32 %v697, %v718
        %v734 = vadd.f32 %v698, %v718
        %v735 = vadd.f32 %v699, %v718
        %v736 = vadd.f32 %v700, %v718
        %v737 = vadd.f32 %v701, %v718
        %v738 = vadd.f32 %v702, %v718
        %v739 = vadd.f32 %v703, %v718
        %v740 = vadd.f32 %v704, %v718
        %v741 = vadd.f32 %v705, %v718
        %v742 = vadd.f32 %v706, %v718
        %v743 = vadd.f32 %v707, %v718
        %v744 = vadd.f32 %v708, %v718
        %v745 = vadd.f32 %v709, %v718
        %v746 = vadd.f32 %v710, %v718
        %v747 = vadd.f32 %v711, %v718
        %v748 = vadd.f32 %v712, %v718
        %v749 = vadd.f32 %v713, %v718
        %v750 = vadd.f32 %v714, %v718
        %v751 = vadd.f32 %v715, %v718
        %v752 = vmax.f32 %v720, 0.0
        %v753 = vmax.f32 %v721, 0.0
        %v754 = vmax.f32 %v722, 0.0
        %v755 = vmax.f32 %v723, 0.0
        %v756 = vmax.f32 %v724, 0.0
        %v757 = vmax.f32 %v725, 0.0
        %v758 = vmax.f32 %v726, 0.0
        %v759 = vmax.f32 %v727, 0.0
        %v760 = vmax.f32 %v728, 0.0
        %v761 = vmax.f32 %v729, 0.0
        %v762 = vmax.f32 %v730, 0.0
        %v763 = vmax.f32 %v731, 0.0
        %v764 = vmax.f32 %v732, 0.0
        %v765 = vmax.f32 %v733, 0.0
        %v766 = vmax.f32 %v734, 0.0
        %v767 = vmax.f32 %v735, 0.0
        %v768 = vmax.f32 %v736, 0.0
        %v769 = vmax.f32 %v737, 0.0
        %v770 = vmax.f32 %v738, 0.0
        %v771 = vmax.f32 %v739, 0.0
        %v772 = vmax.f32 %v740, 0.0
        %v773 = vmax.f32 %v741, 0.0
        %v774 = vmax.f32 %v742, 0.0
        %v775 = vmax.f32 %v743, 0.0
        %v776 = vmax.f32 %v744, 0.0
        %v777 = vmax.f32 %v745, 0.0
        %v778 = vmax.f32 %v746, 0.0
        %v779 = vmax.f32 %v747, 0.0
        %v780 = vmax.f32 %v748, 0.0
        %v781 = vmax.f32 %v749, 0.0
        %v782 = vmax.f32 %v750, 0.0
        %v783 = vmax.f32 %v751, 0.0
        %v784 = vpack.c.bf16 %v752, %v752
        %v785 = vpack.c.bf16 %v753, %v753
        %v786 = vpack.c.bf16 %v754, %v754
        %v787 = vpack.c.bf16 %v755, %v755
        %v788 = vpack.c.bf16 %v756, %v756
        %v789 = vpack.c.bf16 %v757, %v757
        %v790 = vpack.c.bf16 %v758, %v758
        %v791 = vpack.c.bf16 %v759, %v759
        %v792 = vpack.c.bf16 %v760, %v760
        %v793 = vpack.c.bf16 %v761, %v761
        %v794 = vpack.c.bf16 %v762, %v762
        %v795 = vpack.c.bf16 %v763, %v763
        %v796 = vpack.c.bf16 %v764, %v764
        %v797 = vpack.c.bf16 %v765, %v765
        %v798 = vpack.c.bf16 %v766, %v766
        %v799 = vpack.c.bf16 %v767, %v767
        %v800 = vpack.c.bf16 %v768, %v768
        %v801 = vpack.c.bf16 %v769, %v769
        %v802 = vpack.c.bf16 %v770, %v770
        %v803 = vpack.c.bf16 %v771, %v771
        %v804 = vpack.c.bf16 %v772, %v772
        %v805 = vpack.c.bf16 %v773, %v773
        %v806 = vpack.c.bf16 %v774, %v774
        %v807 = vpack.c.bf16 %v775, %v775
        %v808 = vpack.c.bf16 %v776, %v776
        %v809 = vpack.c.bf16 %v777, %v777
        %v810 = vpack.c.bf16 %v778, %v778
        %v811 = vpack.c.bf16 %v779, %v779
        %v812 = vpack.c.bf16 %v780, %v780
        %v813 = vpack.c.bf16 %v781, %v781
        %v814 = vpack.c.bf16 %v782, %v782
        %v815 = vpack.c.bf16 %v783, %v783
        %v848 = vunpack.c.l.b16 %v784
        %v849 = vunpack.c.l.b16 %v785
        %v850 = vunpack.c.l.b16 %v786
        %v851 = vunpack.c.l.b16 %v787
        %v852 = vunpack.c.l.b16 %v788
        %v853 = vunpack.c.l.b16 %v789
        %v854 = vunpack.c.l.b16 %v790
        %v855 = vunpack.c.l.b16 %v791
        %v856 = vunpack.c.l.b16 %v792
        %v857 = vunpack.c.l.b16 %v793
        %v858 = vunpack.c.l.b16 %v794
        %v859 = vunpack.c.l.b16 %v795
        %v860 = vunpack.c.l.b16 %v796
        %v861 = vunpack.c.l.b16 %v797
        %v862 = vunpack.c.l.b16 %v798
        %v863 = vunpack.c.l.b16 %v799
        %v864 = vunpack.c.l.b16 %v800
        %v865 = vunpack.c.l.b16 %v801
        %v866 = vunpack.c.l.b16 %v802
        %v867 = vunpack.c.l.b16 %v803
        %v868 = vunpack.c.l.b16 %v804
        %v869 = vunpack.c.l.b16 %v805
        %v870 = vunpack.c.l.b16 %v806
        %v871 = vunpack.c.l.b16 %v807
        %v872 = vunpack.c.l.b16 %v808
        %v873 = vunpack.c.l.b16 %v809
        %v874 = vunpack.c.l.b16 %v810
        %v875 = vunpack.c.l.b16 %v811
        %v876 = vunpack.c.l.b16 %v812
        %v877 = vunpack.c.l.b16 %v813
        %v878 = vunpack.c.l.b16 %v814
        %v879 = vunpack.c.l.b16 %v815
        %v880 = vpack.c.b16 %v849, %v848
        %v881 = vpack.c.b16 %v851, %v850
        %v882 = vpack.c.b16 %v853, %v852
        %v883 = vpack.c.b16 %v855, %v854
        %v884 = vpack.c.b16 %v857, %v856
        %v885 = vpack.c.b16 %v859, %v858
        %v886 = vpack.c.b16 %v861, %v860
        %v887 = vpack.c.b16 %v863, %v862
        %v888 = vpack.c.b16 %v865, %v864
        %v889 = vpack.c.b16 %v867, %v866
        %v890 = vpack.c.b16 %v869, %v868
        %v891 = vpack.c.b16 %v871, %v870
        %v892 = vpack.c.b16 %v873, %v872
        %v893 = vpack.c.b16 %v875, %v874
        %v894 = vpack.c.b16 %v877, %v876
        %v895 = vpack.c.b16 %v879, %v878
        %v897 = vshrl.u32 0, 16
        %v899 = vrot.slane %v897, 7
        %v900 = vshll.u32 0, 16
        %v902 = vor.u32 %v899, %v900
        %v904 = vshrl.u32 %v880, 16
        %v906 = vrot.slane %v904, 7
        %v907 = vshll.u32 %v880, 16
        %v909 = vor.u32 %v906, %v907
        %v911 = vshrl.u32 %v881, 16
        %v913 = vrot.slane %v911, 7
        %v914 = vshll.u32 %v881, 16
        %v916 = vor.u32 %v913, %v914
        %v918 = vshrl.u32 %v882, 16
        %v920 = vrot.slane %v918, 7
        %v921 = vshll.u32 %v882, 16
        %v923 = vor.u32 %v920, %v921
        %v925 = vshrl.u32 %v883, 16
        %v927 = vrot.slane %v925, 7
        %v928 = vshll.u32 %v883, 16
        %v930 = vor.u32 %v927, %v928
        %v932 = vshrl.u32 %v884, 16
        %v934 = vrot.slane %v932, 7
        %v935 = vshll.u32 %v884, 16
        %v937 = vor.u32 %v934, %v935
        %v939 = vshrl.u32 %v885, 16
        %v941 = vrot.slane %v939, 7
        %v942 = vshll.u32 %v885, 16
        %v944 = vor.u32 %v941, %v942
        %v946 = vshrl.u32 %v886, 16
        %v948 = vrot.slane %v946, 7
        %v949 = vshll.u32 %v886, 16
        %v951 = vor.u32 %v948, %v949
        %v953 = vshrl.u32 %v887, 16
        %v955 = vrot.slane %v953, 7
        %v956 = vshll.u32 %v887, 16
        %v958 = vor.u32 %v955, %v956
        %v960 = vshrl.u32 %v888, 16
        %v962 = vrot.slane %v960, 7
        %v963 = vshll.u32 %v888, 16
        %v965 = vor.u32 %v962, %v963
        %v967 = vshrl.u32 %v889, 16
        %v969 = vrot.slane %v967, 7
        %v970 = vshll.u32 %v889, 16
        %v972 = vor.u32 %v969, %v970
        %v974 = vshrl.u32 %v890, 16
        %v976 = vrot.slane %v974, 7
        %v977 = vshll.u32 %v890, 16
        %v979 = vor.u32 %v976, %v977
        %v981 = vshrl.u32 %v891, 16
        %v983 = vrot.slane %v981, 7
        %v984 = vshll.u32 %v891, 16
        %v986 = vor.u32 %v983, %v984
        %v988 = vshrl.u32 %v892, 16
        %v990 = vrot.slane %v988, 7
        %v991 = vshll.u32 %v892, 16
        %v993 = vor.u32 %v990, %v991
        %v995 = vshrl.u32 %v893, 16
        %v997 = vrot.slane %v995, 7
        %v998 = vshll.u32 %v893, 16
        %v1000 = vor.u32 %v997, %v998
        %v1002 = vshrl.u32 %v894, 16
        %v1004 = vrot.slane %v1002, 7
        %v1005 = vshll.u32 %v894, 16
        %v1007 = vor.u32 %v1004, %v1005
        %v1009 = vshrl.u32 %v895, 16
        %v1011 = vrot.slane %v1009, 7
        %v1012 = vshll.u32 %v895, 16
        %v1014 = vor.u32 %v1011, %v1012
        %vm1049 = vcmask 1040384
        %vm1050 = vsmask.f32 256
        %vm1051 = vmand %vm1049, %vm1050
        %v1052 = vsel %vm1051, 0, %v902
        %v1053 = vsel %vm1051, 0, %v909
        %v1054 = vsel %vm1051, 0, %v916
        %v1055 = vsel %vm1051, 0, %v923
        %v1056 = vsel %vm1051, 0, %v930
        %v1057 = vsel %vm1051, 0, %v937
        %v1058 = vsel %vm1051, 0, %v944
        %v1059 = vsel %vm1051, 0, %v951
        %v1060 = vsel %vm1051, 0, %v958
        %v1061 = vsel %vm1051, 0, %v965
        %v1062 = vsel %vm1051, 0, %v972
        %v1063 = vsel %vm1051, 0, %v979
        %v1064 = vsel %vm1051, 0, %v986
        %v1065 = vsel %vm1051, 0, %v993
        %v1066 = vsel %vm1051, 0, %v1000
        %v1067 = vsel %vm1051, 0, %v1007
        %v1068 = vsel %vm1051, 0, %v1014
        %v1069 = vsel %vm1051, %v899, 0
        %v1070 = vsel %vm1051, %v906, 0
        %v1071 = vsel %vm1051, %v913, 0
        %v1072 = vsel %vm1051, %v920, 0
        %v1073 = vsel %vm1051, %v927, 0
        %v1074 = vsel %vm1051, %v934, 0
        %v1075 = vsel %vm1051, %v941, 0
        %v1076 = vsel %vm1051, %v948, 0
        %v1077 = vsel %vm1051, %v955, 0
        %v1078 = vsel %vm1051, %v962, 0
        %v1079 = vsel %vm1051, %v969, 0
        %v1080 = vsel %vm1051, %v976, 0
        %v1081 = vsel %vm1051, %v983, 0
        %v1082 = vsel %vm1051, %v990, 0
        %v1083 = vsel %vm1051, %v997, 0
        %v1084 = vsel %vm1051, %v1004, 0
        %v1085 = vsel %vm1051, %v1011, 0
        %vm1086 = vsmask.f32 7424
        %v1088 = vshrl.u32 %v1052, 16
        %v1090 = vshll.u32 %v1052, 16
        %v1092 = vrot.slane %v1090, 1
        %v1093 = vor.u32 %v1088, %v1092
        %v1095 = vshll.u32 %v1069, 16
        %v1097 = vrot.slane %v1095, 1
        %v1098 = vsel %vm1086, %v1093, %v1097
        %v1100 = vshrl.u32 %v1053, 16
        %v1102 = vshll.u32 %v1053, 16
        %v1104 = vrot.slane %v1102, 1
        %v1105 = vor.u32 %v1100, %v1104
        %v1107 = vshll.u32 %v1070, 16
        %v1109 = vrot.slane %v1107, 1
        %v1110 = vsel %vm1086, %v1105, %v1109
        %v1112 = vshrl.u32 %v1054, 16
        %v1114 = vshll.u32 %v1054, 16
        %v1116 = vrot.slane %v1114, 1
        %v1117 = vor.u32 %v1112, %v1116
        %v1119 = vshll.u32 %v1071, 16
        %v1121 = vrot.slane %v1119, 1
        %v1122 = vsel %vm1086, %v1117, %v1121
        %v1124 = vshrl.u32 %v1055, 16
        %v1126 = vshll.u32 %v1055, 16
        %v1128 = vrot.slane %v1126, 1
        %v1129 = vor.u32 %v1124, %v1128
        %v1131 = vshll.u32 %v1072, 16
        %v1133 = vrot.slane %v1131, 1
        %v1134 = vsel %vm1086, %v1129, %v1133
        %v1136 = vshrl.u32 %v1056, 16
        %v1138 = vshll.u32 %v1056, 16
        %v1140 = vrot.slane %v1138, 1
        %v1141 = vor.u32 %v1136, %v1140
        %v1143 = vshll.u32 %v1073, 16
        %v1145 = vrot.slane %v1143, 1
        %v1146 = vsel %vm1086, %v1141, %v1145
        %v1148 = vshrl.u32 %v1057, 16
        %v1150 = vshll.u32 %v1057, 16
        %v1152 = vrot.slane %v1150, 1
        %v1153 = vor.u32 %v1148, %v1152
        %v1155 = vshll.u32 %v1074, 16
        %v1157 = vrot.slane %v1155, 1
        %v1158 = vsel %vm1086, %v1153, %v1157
        %v1160 = vshrl.u32 %v1058, 16
        %v1162 = vshll.u32 %v1058, 16
        %v1164 = vrot.slane %v1162, 1
        %v1165 = vor.u32 %v1160, %v1164
        %v1167 = vshll.u32 %v1075, 16
        %v1169 = vrot.slane %v1167, 1
        %v1170 = vsel %vm1086, %v1165, %v1169
        %v1172 = vshrl.u32 %v1059, 16
        %v1174 = vshll.u32 %v1059, 16
        %v1176 = vrot.slane %v1174, 1
        %v1177 = vor.u32 %v1172, %v1176
        %v1179 = vshll.u32 %v1076, 16
        %v1181 = vrot.slane %v1179, 1
        %v1182 = vsel %vm1086, %v1177, %v1181
        %v1184 = vshrl.u32 %v1060, 16
        %v1186 = vshll.u32 %v1060, 16
        %v1188 = vrot.slane %v1186, 1
        %v1189 = vor.u32 %v1184, %v1188
        %v1191 = vshll.u32 %v1077, 16
        %v1193 = vrot.slane %v1191, 1
        %v1194 = vsel %vm1086, %v1189, %v1193
        %v1196 = vshrl.u32 %v1061, 16
        %v1198 = vshll.u32 %v1061, 16
        %v1200 = vrot.slane %v1198, 1
        %v1201 = vor.u32 %v1196, %v1200
        %v1203 = vshll.u32 %v1078, 16
        %v1205 = vrot.slane %v1203, 1
        %v1206 = vsel %vm1086, %v1201, %v1205
        %v1208 = vshrl.u32 %v1062, 16
        %v1210 = vshll.u32 %v1062, 16
        %v1212 = vrot.slane %v1210, 1
        %v1213 = vor.u32 %v1208, %v1212
        %v1215 = vshll.u32 %v1079, 16
        %v1217 = vrot.slane %v1215, 1
        %v1218 = vsel %vm1086, %v1213, %v1217
        %v1220 = vshrl.u32 %v1063, 16
        %v1222 = vshll.u32 %v1063, 16
        %v1224 = vrot.slane %v1222, 1
        %v1225 = vor.u32 %v1220, %v1224
        %v1227 = vshll.u32 %v1080, 16
        %v1229 = vrot.slane %v1227, 1
        %v1230 = vsel %vm1086, %v1225, %v1229
        %v1232 = vshrl.u32 %v1064, 16
        %v1234 = vshll.u32 %v1064, 16
        %v1236 = vrot.slane %v1234, 1
        %v1237 = vor.u32 %v1232, %v1236
        %v1239 = vshll.u32 %v1081, 16
        %v1241 = vrot.slane %v1239, 1
        %v1242 = vsel %vm1086, %v1237, %v1241
        %v1244 = vshrl.u32 %v1065, 16
        %v1246 = vshll.u32 %v1065, 16
        %v1248 = vrot.slane %v1246, 1
        %v1249 = vor.u32 %v1244, %v1248
        %v1251 = vshll.u32 %v1082, 16
        %v1253 = vrot.slane %v1251, 1
        %v1254 = vsel %vm1086, %v1249, %v1253
        %v1256 = vshrl.u32 %v1066, 16
        %v1258 = vshll.u32 %v1066, 16
        %v1260 = vrot.slane %v1258, 1
        %v1261 = vor.u32 %v1256, %v1260
        %v1263 = vshll.u32 %v1083, 16
        %v1265 = vrot.slane %v1263, 1
        %v1266 = vsel %vm1086, %v1261, %v1265
        %v1268 = vshrl.u32 %v1067, 16
        %v1270 = vshll.u32 %v1067, 16
        %v1272 = vrot.slane %v1270, 1
        %v1273 = vor.u32 %v1268, %v1272
        %v1275 = vshll.u32 %v1084, 16
        %v1277 = vrot.slane %v1275, 1
        %v1278 = vsel %vm1086, %v1273, %v1277
        %1279 = vrot.lane.b32.xlu0 %v1098, 32
        %v1280 = vpop.permute.xlu0 %1279
        %1281 = vrot.lane.b32.xlu0 %v1110, 32
        %v1282 = vpop.permute.xlu0 %1281
        %1283 = vrot.lane.b32.xlu0 %v1122, 32
        %v1284 = vpop.permute.xlu0 %1283
        %1285 = vrot.lane.b32.xlu0 %v1134, 32
        %v1286 = vpop.permute.xlu0 %1285
        %1287 = vrot.lane.b32.xlu0 %v1146, 32
        %v1288 = vpop.permute.xlu0 %1287
        %1289 = vrot.lane.b32.xlu0 %v1158, 32
        %v1290 = vpop.permute.xlu0 %1289
        %1291 = vrot.lane.b32.xlu0 %v1170, 32
        %v1292 = vpop.permute.xlu0 %1291
        %1293 = vrot.lane.b32.xlu0 %v1182, 32
        %v1294 = vpop.permute.xlu0 %1293
        %1295 = vrot.lane.b32.xlu0 %v1194, 32
        %v1296 = vpop.permute.xlu0 %1295
        %1297 = vrot.lane.b32.xlu0 %v1206, 32
        %v1298 = vpop.permute.xlu0 %1297
        %1299 = vrot.lane.b32.xlu0 %v1218, 32
        %v1300 = vpop.permute.xlu0 %1299
        %1301 = vrot.lane.b32.xlu0 %v1230, 32
        %v1302 = vpop.permute.xlu0 %1301
        %1303 = vrot.lane.b32.xlu0 %v1242, 32
        %v1304 = vpop.permute.xlu0 %1303
        %1305 = vrot.lane.b32.xlu0 %v1254, 32
        %v1306 = vpop.permute.xlu0 %1305
        %1307 = vrot.lane.b32.xlu0 %v1266, 32
        %v1308 = vpop.permute.xlu0 %1307
        %1309 = vrot.lane.b32.xlu0 %v1278, 32
        %v1310 = vpop.permute.xlu0 %1309
        %vm1343 = vcmask 1046528
        %v1344 = vrot.slane %v1052, 1
        %v1345 = vrot.slane %v1069, 1
        %v1346 = vsel %vm1343, %v1344, %v1345
        %v1347 = vrot.slane %v1053, 1
        %v1348 = vrot.slane %v1070, 1
        %v1349 = vsel %vm1343, %v1347, %v1348
        %v1350 = vrot.slane %v1054, 1
        %v1351 = vrot.slane %v1071, 1
        %v1352 = vsel %vm1343, %v1350, %v1351
        %v1353 = vrot.slane %v1055, 1
        %v1354 = vrot.slane %v1072, 1
        %v1355 = vsel %vm1343, %v1353, %v1354
        %v1356 = vrot.slane %v1056, 1
        %v1357 = vrot.slane %v1073, 1
        %v1358 = vsel %vm1343, %v1356, %v1357
        %v1359 = vrot.slane %v1057, 1
        %v1360 = vrot.slane %v1074, 1
        %v1361 = vsel %vm1343, %v1359, %v1360
        %v1362 = vrot.slane %v1058, 1
        %v1363 = vrot.slane %v1075, 1
        %v1364 = vsel %vm1343, %v1362, %v1363
        %v1365 = vrot.slane %v1059, 1
        %v1366 = vrot.slane %v1076, 1
        %v1367 = vsel %vm1343, %v1365, %v1366
        %v1368 = vrot.slane %v1060, 1
        %v1369 = vrot.slane %v1077, 1
        %v1370 = vsel %vm1343, %v1368, %v1369
        %v1371 = vrot.slane %v1061, 1
        %v1372 = vrot.slane %v1078, 1
        %v1373 = vsel %vm1343, %v1371, %v1372
        %v1374 = vrot.slane %v1062, 1
        %v1375 = vrot.slane %v1079, 1
        %v1376 = vsel %vm1343, %v1374, %v1375
        %v1377 = vrot.slane %v1063, 1
        %v1378 = vrot.slane %v1080, 1
        %v1379 = vsel %vm1343, %v1377, %v1378
        %v1380 = vrot.slane %v1064, 1
        %v1381 = vrot.slane %v1081, 1
        %v1382 = vsel %vm1343, %v1380, %v1381
        %v1383 = vrot.slane %v1065, 1
        %v1384 = vrot.slane %v1082, 1
        %v1385 = vsel %vm1343, %v1383, %v1384
        %v1386 = vrot.slane %v1066, 1
        %v1387 = vrot.slane %v1083, 1
        %v1388 = vsel %vm1343, %v1386, %v1387
        %v1389 = vrot.slane %v1067, 1
        %v1390 = vrot.slane %v1084, 1
        %v1391 = vsel %vm1343, %v1389, %v1390
        %1392 = vrot.lane.b32.xlu0 %v1346, 64
        %v1393 = vpop.permute.xlu0 %1392
        %1394 = vrot.lane.b32.xlu0 %v1349, 64
        %v1395 = vpop.permute.xlu0 %1394
        %1396 = vrot.lane.b32.xlu0 %v1352, 64
        %v1397 = vpop.permute.xlu0 %1396
        %1398 = vrot.lane.b32.xlu0 %v1355, 64
        %v1399 = vpop.permute.xlu0 %1398
        %1400 = vrot.lane.b32.xlu0 %v1358, 64
        %v1401 = vpop.permute.xlu0 %1400
        %1402 = vrot.lane.b32.xlu0 %v1361, 64
        %v1403 = vpop.permute.xlu0 %1402
        %1404 = vrot.lane.b32.xlu0 %v1364, 64
        %v1405 = vpop.permute.xlu0 %1404
        %1406 = vrot.lane.b32.xlu0 %v1367, 64
        %v1407 = vpop.permute.xlu0 %1406
        %1408 = vrot.lane.b32.xlu0 %v1370, 64
        %v1409 = vpop.permute.xlu0 %1408
        %1410 = vrot.lane.b32.xlu0 %v1373, 64
        %v1411 = vpop.permute.xlu0 %1410
        %1412 = vrot.lane.b32.xlu0 %v1376, 64
        %v1413 = vpop.permute.xlu0 %1412
        %1414 = vrot.lane.b32.xlu0 %v1379, 64
        %v1415 = vpop.permute.xlu0 %1414
        %1416 = vrot.lane.b32.xlu0 %v1382, 64
        %v1417 = vpop.permute.xlu0 %1416
        %1418 = vrot.lane.b32.xlu0 %v1385, 64
        %v1419 = vpop.permute.xlu0 %1418
        %1420 = vrot.lane.b32.xlu0 %v1388, 64
        %v1421 = vpop.permute.xlu0 %1420
        %1422 = vrot.lane.b32.xlu0 %v1391, 64
        %v1423 = vpop.permute.xlu0 %1422
        %1425 = vrot.lane.b32.xlu0 %v1053, 96
        %v1426 = vpop.permute.xlu0 %1425
        %1427 = vrot.lane.b32.xlu0 %v1054, 96
        %v1428 = vpop.permute.xlu0 %1427
        %1429 = vrot.lane.b32.xlu0 %v1055, 96
        %v1430 = vpop.permute.xlu0 %1429
        %1431 = vrot.lane.b32.xlu0 %v1056, 96
        %v1432 = vpop.permute.xlu0 %1431
        %1433 = vrot.lane.b32.xlu0 %v1057, 96
        %v1434 = vpop.permute.xlu0 %1433
        %1435 = vrot.lane.b32.xlu0 %v1058, 96
        %v1436 = vpop.permute.xlu0 %1435
        %1437 = vrot.lane.b32.xlu0 %v1059, 96
        %v1438 = vpop.permute.xlu0 %1437
        %1439 = vrot.lane.b32.xlu0 %v1060, 96
        %v1440 = vpop.permute.xlu0 %1439
        %1441 = vrot.lane.b32.xlu0 %v1061, 96
        %v1442 = vpop.permute.xlu0 %1441
        %1443 = vrot.lane.b32.xlu0 %v1062, 96
        %v1444 = vpop.permute.xlu0 %1443
        %1445 = vrot.lane.b32.xlu0 %v1063, 96
        %v1446 = vpop.permute.xlu0 %1445
        %1447 = vrot.lane.b32.xlu0 %v1064, 96
        %v1448 = vpop.permute.xlu0 %1447
        %1449 = vrot.lane.b32.xlu0 %v1065, 96
        %v1450 = vpop.permute.xlu0 %1449
        %1451 = vrot.lane.b32.xlu0 %v1066, 96
        %v1452 = vpop.permute.xlu0 %1451
        %1453 = vrot.lane.b32.xlu0 %v1067, 96
        %v1454 = vpop.permute.xlu0 %1453
        %1455 = vrot.lane.b32.xlu0 %v1068, 96
        %v1456 = vpop.permute.xlu0 %1455
        %v1458 = vshrl.u32 %v1068, 16
        %v1460 = vshll.u32 %v1068, 16
        %v1462 = vrot.slane %v1460, 1
        %v1463 = vor.u32 %v1458, %v1462
        %v1465 = vshll.u32 %v1085, 16
        %v1467 = vrot.slane %v1465, 1
        %v1468 = vsel %vm1086, %v1463, %v1467
        %v1470 = vrot.slane %v1068, 1
        %v1471 = vrot.slane %v1085, 1
        %v1472 = vsel %vm1343, %v1470, %v1471
        %1473 = vrot.lane.b32.xlu0 %v1349, 32
        %v1474 = vpop.permute.xlu0 %1473
        %1475 = vrot.lane.b32.xlu0 %v1352, 32
        %v1476 = vpop.permute.xlu0 %1475
        %1477 = vrot.lane.b32.xlu0 %v1355, 32
        %v1478 = vpop.permute.xlu0 %1477
        %1479 = vrot.lane.b32.xlu0 %v1358, 32
        %v1480 = vpop.permute.xlu0 %1479
        %1481 = vrot.lane.b32.xlu0 %v1361, 32
        %v1482 = vpop.permute.xlu0 %1481
        %1483 = vrot.lane.b32.xlu0 %v1364, 32
        %v1484 = vpop.permute.xlu0 %1483
        %1485 = vrot.lane.b32.xlu0 %v1367, 32
        %v1486 = vpop.permute.xlu0 %1485
        %1487 = vrot.lane.b32.xlu0 %v1370, 32
        %v1488 = vpop.permute.xlu0 %1487
        %1489 = vrot.lane.b32.xlu0 %v1373, 32
        %v1490 = vpop.permute.xlu0 %1489
        %1491 = vrot.lane.b32.xlu0 %v1376, 32
        %v1492 = vpop.permute.xlu0 %1491
        %1493 = vrot.lane.b32.xlu0 %v1379, 32
        %v1494 = vpop.permute.xlu0 %1493
        %1495 = vrot.lane.b32.xlu0 %v1382, 32
        %v1496 = vpop.permute.xlu0 %1495
        %1497 = vrot.lane.b32.xlu0 %v1385, 32
        %v1498 = vpop.permute.xlu0 %1497
        %1499 = vrot.lane.b32.xlu0 %v1388, 32
        %v1500 = vpop.permute.xlu0 %1499
        %1501 = vrot.lane.b32.xlu0 %v1391, 32
        %v1502 = vpop.permute.xlu0 %1501
        %1503 = vrot.lane.b32.xlu0 %v1472, 32
        %v1504 = vpop.permute.xlu0 %1503
        %1505 = vrot.lane.b32.xlu0 %v1054, 64
        %v1506 = vpop.permute.xlu0 %1505
        %1507 = vrot.lane.b32.xlu0 %v1055, 64
        %v1508 = vpop.permute.xlu0 %1507
        %1509 = vrot.lane.b32.xlu0 %v1056, 64
        %v1510 = vpop.permute.xlu0 %1509
        %1511 = vrot.lane.b32.xlu0 %v1057, 64
        %v1512 = vpop.permute.xlu0 %1511
        %1513 = vrot.lane.b32.xlu0 %v1058, 64
        %v1514 = vpop.permute.xlu0 %1513
        %1515 = vrot.lane.b32.xlu0 %v1059, 64
        %v1516 = vpop.permute.xlu0 %1515
        %1517 = vrot.lane.b32.xlu0 %v1060, 64
        %v1518 = vpop.permute.xlu0 %1517
        %1519 = vrot.lane.b32.xlu0 %v1061, 64
        %v1520 = vpop.permute.xlu0 %1519
        %1521 = vrot.lane.b32.xlu0 %v1062, 64
        %v1522 = vpop.permute.xlu0 %1521
        %1523 = vrot.lane.b32.xlu0 %v1063, 64
        %v1524 = vpop.permute.xlu0 %1523
        %1525 = vrot.lane.b32.xlu0 %v1064, 64
        %v1526 = vpop.permute.xlu0 %1525
        %1527 = vrot.lane.b32.xlu0 %v1065, 64
        %v1528 = vpop.permute.xlu0 %1527
        %1529 = vrot.lane.b32.xlu0 %v1066, 64
        %v1530 = vpop.permute.xlu0 %1529
        %1531 = vrot.lane.b32.xlu0 %v1067, 64
        %v1532 = vpop.permute.xlu0 %1531
        %1533 = vrot.lane.b32.xlu0 %v1068, 64
        %v1534 = vpop.permute.xlu0 %1533
        %1535 = vrot.lane.b32.xlu0 %v1052, 64
        %v1536 = vpop.permute.xlu0 %1535
        %1537 = vrot.lane.b32.xlu0 %v1122, 96
        %v1538 = vpop.permute.xlu0 %1537
        %1539 = vrot.lane.b32.xlu0 %v1134, 96
        %v1540 = vpop.permute.xlu0 %1539
        %1541 = vrot.lane.b32.xlu0 %v1146, 96
        %v1542 = vpop.permute.xlu0 %1541
        %1543 = vrot.lane.b32.xlu0 %v1158, 96
        %v1544 = vpop.permute.xlu0 %1543
        %1545 = vrot.lane.b32.xlu0 %v1170, 96
        %v1546 = vpop.permute.xlu0 %1545
        %1547 = vrot.lane.b32.xlu0 %v1182, 96
        %v1548 = vpop.permute.xlu0 %1547
        %1549 = vrot.lane.b32.xlu0 %v1194, 96
        %v1550 = vpop.permute.xlu0 %1549
        %1551 = vrot.lane.b32.xlu0 %v1206, 96
        %v1552 = vpop.permute.xlu0 %1551
        %1553 = vrot.lane.b32.xlu0 %v1218, 96
        %v1554 = vpop.permute.xlu0 %1553
        %1555 = vrot.lane.b32.xlu0 %v1230, 96
        %v1556 = vpop.permute.xlu0 %1555
        %1557 = vrot.lane.b32.xlu0 %v1242, 96
        %v1558 = vpop.permute.xlu0 %1557
        %1559 = vrot.lane.b32.xlu0 %v1254, 96
        %v1560 = vpop.permute.xlu0 %1559
        %1561 = vrot.lane.b32.xlu0 %v1266, 96
        %v1562 = vpop.permute.xlu0 %1561
        %1563 = vrot.lane.b32.xlu0 %v1278, 96
        %v1564 = vpop.permute.xlu0 %1563
        %1565 = vrot.lane.b32.xlu0 %v1468, 96
        %v1566 = vpop.permute.xlu0 %1565
        %1567 = vrot.lane.b32.xlu0 %v1098, 96
        %v1568 = vpop.permute.xlu0 %1567
        %vm1569 = vcmask 261120
        %v1571 = vsel %vm1569, %v1052, %v1280
        %v1573 = vsel %vm1569, %v1053, %v1282
        %v1575 = vsel %vm1569, %v1054, %v1284
        %v1577 = vsel %vm1569, %v1055, %v1286
        %v1579 = vsel %vm1569, %v1056, %v1288
        %v1581 = vsel %vm1569, %v1057, %v1290
        %v1583 = vsel %vm1569, %v1058, %v1292
        %v1585 = vsel %vm1569, %v1059, %v1294
        %v1587 = vsel %vm1569, %v1060, %v1296
        %v1589 = vsel %vm1569, %v1061, %v1298
        %v1591 = vsel %vm1569, %v1062, %v1300
        %v1593 = vsel %vm1569, %v1063, %v1302
        %v1595 = vsel %vm1569, %v1064, %v1304
        %v1597 = vsel %vm1569, %v1065, %v1306
        %v1599 = vsel %vm1569, %v1066, %v1308
        %v1601 = vsel %vm1569, %v1067, %v1310
        %v1603 = vsel %vm542, %v1571, %v1393
        %v1605 = vsel %vm542, %v1573, %v1395
        %v1607 = vsel %vm542, %v1575, %v1397
        %v1609 = vsel %vm542, %v1577, %v1399
        %v1611 = vsel %vm542, %v1579, %v1401
        %v1613 = vsel %vm542, %v1581, %v1403
        %v1615 = vsel %vm542, %v1583, %v1405
        %v1617 = vsel %vm542, %v1585, %v1407
        %v1619 = vsel %vm542, %v1587, %v1409
        %v1621 = vsel %vm542, %v1589, %v1411
        %v1623 = vsel %vm542, %v1591, %v1413
        %v1625 = vsel %vm542, %v1593, %v1415
        %v1627 = vsel %vm542, %v1595, %v1417
        %v1629 = vsel %vm542, %v1597, %v1419
        %v1631 = vsel %vm542, %v1599, %v1421
        %v1633 = vsel %vm542, %v1601, %v1423
        %vm1634 = vcmask 785408
        %v1636 = vsel %vm1634, %v1603, %v1426
        %v1639 = vsel %vm1634, %v1605, %v1428
        %v1642 = vsel %vm1634, %v1607, %v1430
        %v1645 = vsel %vm1634, %v1609, %v1432
        %v1648 = vsel %vm1634, %v1611, %v1434
        %v1651 = vsel %vm1634, %v1613, %v1436
        %v1654 = vsel %vm1634, %v1615, %v1438
        %v1657 = vsel %vm1634, %v1617, %v1440
        %v1660 = vsel %vm1634, %v1619, %v1442
        %v1663 = vsel %vm1634, %v1621, %v1444
        %v1666 = vsel %vm1634, %v1623, %v1446
        %v1669 = vsel %vm1634, %v1625, %v1448
        %v1672 = vsel %vm1634, %v1627, %v1450
        %v1675 = vsel %vm1634, %v1629, %v1452
        %v1678 = vsel %vm1634, %v1631, %v1454
        %v1681 = vsel %vm1634, %v1633, %v1456
        %v1685 = vsel %vm1569, %v1110, %v1474
        %v1688 = vsel %vm1569, %v1122, %v1476
        %v1691 = vsel %vm1569, %v1134, %v1478
        %v1694 = vsel %vm1569, %v1146, %v1480
        %v1697 = vsel %vm1569, %v1158, %v1482
        %v1700 = vsel %vm1569, %v1170, %v1484
        %v1703 = vsel %vm1569, %v1182, %v1486
        %v1706 = vsel %vm1569, %v1194, %v1488
        %v1709 = vsel %vm1569, %v1206, %v1490
        %v1712 = vsel %vm1569, %v1218, %v1492
        %v1715 = vsel %vm1569, %v1230, %v1494
        %v1718 = vsel %vm1569, %v1242, %v1496
        %v1721 = vsel %vm1569, %v1254, %v1498
        %v1724 = vsel %vm1569, %v1266, %v1500
        %v1727 = vsel %vm1569, %v1278, %v1502
        %v1730 = vsel %vm1569, %v1468, %v1504
        %v1732 = vsel %vm542, %v1685, %v1506
        %v1734 = vsel %vm542, %v1688, %v1508
        %v1736 = vsel %vm542, %v1691, %v1510
        %v1738 = vsel %vm542, %v1694, %v1512
        %v1740 = vsel %vm542, %v1697, %v1514
        %v1742 = vsel %vm542, %v1700, %v1516
        %v1744 = vsel %vm542, %v1703, %v1518
        %v1746 = vsel %vm542, %v1706, %v1520
        %v1748 = vsel %vm542, %v1709, %v1522
        %v1750 = vsel %vm542, %v1712, %v1524
        %v1752 = vsel %vm542, %v1715, %v1526
        %v1754 = vsel %vm542, %v1718, %v1528
        %v1756 = vsel %vm542, %v1721, %v1530
        %v1758 = vsel %vm542, %v1724, %v1532
        %v1760 = vsel %vm542, %v1727, %v1534
        %v1762 = vsel %vm542, %v1730, %v1536
        %v1764 = vsel %vm1634, %v1732, %v1538
        %v1767 = vsel %vm1634, %v1734, %v1540
        %v1770 = vsel %vm1634, %v1736, %v1542
        %v1773 = vsel %vm1634, %v1738, %v1544
        %v1776 = vsel %vm1634, %v1740, %v1546
        %v1779 = vsel %vm1634, %v1742, %v1548
        %v1782 = vsel %vm1634, %v1744, %v1550
        %v1785 = vsel %vm1634, %v1746, %v1552
        %v1788 = vsel %vm1634, %v1748, %v1554
        %v1791 = vsel %vm1634, %v1750, %v1556
        %v1794 = vsel %vm1634, %v1752, %v1558
        %v1797 = vsel %vm1634, %v1754, %v1560
        %v1800 = vsel %vm1634, %v1756, %v1562
        %v1803 = vsel %vm1634, %v1758, %v1564
        %v1806 = vsel %vm1634, %v1760, %v1566
        %v1809 = vsel %vm1634, %v1762, %v1568
        %v1811 = vld [vmem:[%s4] sm:$0xf]
        %v1812 = vld [vmem:[%s4 + $0x4] sm:$0xf]
        %v1813 = vld [vmem:[%s4 + $0x8] sm:$0xf]
        %v1814 = vld [vmem:[%s4 + $0xc] sm:$0xf]
        %v1815 = vld [vmem:[%s4 + $0x10] sm:$0xf]
        %v1816 = vld [vmem:[%s4 + $0x14] sm:$0xf]
        %v1817 = vld [vmem:[%s4 + $0x18] sm:$0xf]
        %v1818 = vld [vmem:[%s4 + $0x1c] sm:$0xf]
        %v1819 = vld [vmem:[%s4 + $0x20] sm:$0xf]
        %v1820 = vld [vmem:[%s4 + $0x24] sm:$0xf]
        %v1821 = vld [vmem:[%s4 + $0x28] sm:$0xf]
        %v1822 = vld [vmem:[%s4 + $0x2c] sm:$0xf]
        %v1823 = vld [vmem:[%s4 + $0x30] sm:$0xf]
        %v1824 = vld [vmem:[%s4 + $0x34] sm:$0xf]
        %v1825 = vld [vmem:[%s4 + $0x38] sm:$0xf]
        %v1826 = vld [vmem:[%s4 + $0x3c] sm:$0xf]
        %v1827 = vld [vmem:[%s4 + $0x40] sm:$0xf]
        %v1828 = vld [vmem:[%s4 + $0x44] sm:$0xf]
        %v1829 = vld [vmem:[%s4 + $0x48] sm:$0xf]
        %v1830 = vld [vmem:[%s4 + $0x4c] sm:$0xf]
        %v1831 = vld [vmem:[%s4 + $0x50] sm:$0xf]
        %v1832 = vld [vmem:[%s4 + $0x54] sm:$0xf]
        %v1833 = vld [vmem:[%s4 + $0x58] sm:$0xf]
        %v1834 = vld [vmem:[%s4 + $0x5c] sm:$0xf]
        %v1835 = vld [vmem:[%s4 + $0x60] sm:$0xf]
        %v1836 = vld [vmem:[%s4 + $0x64] sm:$0xf]
        %v1837 = vld [vmem:[%s4 + $0x68] sm:$0xf]
        %v1838 = vld [vmem:[%s4 + $0x6c] sm:$0xf]
        %v1839 = vld [vmem:[%s4 + $0x70] sm:$0xf]
        %v1840 = vld [vmem:[%s4 + $0x74] sm:$0xf]
        %v1841 = vld [vmem:[%s4 + $0x78] sm:$0xf]
        %v1842 = vld [vmem:[%s4 + $0x7c] sm:$0xf]
        %v1843 = vld [vmem:[%s4 + $0x80] sm:$0xf]
        %v1844 = vld [vmem:[%s4 + $0x84] sm:$0xf]
        %v1845 = vld [vmem:[%s4 + $0x88] sm:$0xf]
        %v1846 = vld [vmem:[%s4 + $0x8c] sm:$0xf]
        %v1883 = vunpack.c.l.b16 %v1811
        %v1884 = vunpack.c.l.b16 %v1812
        %v1885 = vunpack.c.l.b16 %v1813
        %v1886 = vunpack.c.l.b16 %v1814
        %v1887 = vunpack.c.l.b16 %v1815
        %v1888 = vunpack.c.l.b16 %v1816
        %v1889 = vunpack.c.l.b16 %v1817
        %v1890 = vunpack.c.l.b16 %v1818
        %v1891 = vunpack.c.l.b16 %v1819
        %v1892 = vunpack.c.l.b16 %v1820
        %v1893 = vunpack.c.l.b16 %v1821
        %v1894 = vunpack.c.l.b16 %v1822
        %v1895 = vunpack.c.l.b16 %v1823
        %v1896 = vunpack.c.l.b16 %v1824
        %v1897 = vunpack.c.l.b16 %v1825
        %v1898 = vunpack.c.l.b16 %v1826
        %v1899 = vunpack.c.l.b16 %v1827
        %v1900 = vunpack.c.l.b16 %v1828
        %v1901 = vunpack.c.l.b16 %v1829
        %v1902 = vunpack.c.l.b16 %v1830
        %v1903 = vunpack.c.l.b16 %v1831
        %v1904 = vunpack.c.l.b16 %v1832
        %v1905 = vunpack.c.l.b16 %v1833
        %v1906 = vunpack.c.l.b16 %v1834
        %v1907 = vunpack.c.l.b16 %v1835
        %v1908 = vunpack.c.l.b16 %v1836
        %v1909 = vunpack.c.l.b16 %v1837
        %v1910 = vunpack.c.l.b16 %v1838
        %v1911 = vunpack.c.l.b16 %v1839
        %v1912 = vunpack.c.l.b16 %v1840
        %v1913 = vunpack.c.l.b16 %v1841
        %v1914 = vunpack.c.l.b16 %v1842
        %v1915 = vunpack.c.l.b16 %v1843
        %v1916 = vunpack.c.l.b16 %v1844
        %v1917 = vunpack.c.l.b16 %v1845
        %v1918 = vunpack.c.l.b16 %v1846
        %v1919 = vpack.c.b16 %v1884, %v1883
        %v1920 = vpack.c.b16 %v1886, %v1885
        %v1921 = vpack.c.b16 %v1888, %v1887
        %v1922 = vpack.c.b16 %v1890, %v1889
        %v1923 = vpack.c.b16 %v1892, %v1891
        %v1924 = vpack.c.b16 %v1894, %v1893
        %v1925 = vpack.c.b16 %v1896, %v1895
        %v1926 = vpack.c.b16 %v1898, %v1897
        %v1927 = vpack.c.b16 %v1900, %v1899
        %v1928 = vpack.c.b16 %v1902, %v1901
        %v1929 = vpack.c.b16 %v1904, %v1903
        %v1930 = vpack.c.b16 %v1906, %v1905
        %v1931 = vpack.c.b16 %v1908, %v1907
        %v1932 = vpack.c.b16 %v1910, %v1909
        %v1933 = vpack.c.b16 %v1912, %v1911
        %v1934 = vpack.c.b16 %v1914, %v1913
        %v1935 = vpack.c.b16 %v1916, %v1915
        %v1936 = vpack.c.b16 %v1918, %v1917
        %v1956 = vsel %vm1569, %v1352, 0
        %v1959 = vsel %vm1569, %v1355, 0
        %v1962 = vsel %vm1569, %v1358, 0
        %v1965 = vsel %vm1569, %v1361, 0
        %v1968 = vsel %vm1569, %v1364, 0
        %v1971 = vsel %vm1569, %v1367, 0
        %v1974 = vsel %vm1569, %v1370, 0
        %v1977 = vsel %vm1569, %v1373, 0
        %v1980 = vsel %vm1569, %v1376, 0
        %v1983 = vsel %vm1569, %v1379, 0
        %v1986 = vsel %vm1569, %v1382, 0
        %v1989 = vsel %vm1569, %v1385, 0
        %v1992 = vsel %vm1569, %v1388, 0
        %v1995 = vsel %vm1569, %v1391, 0
        %v1998 = vsel %vm1569, %v1472, 0
        %v2001 = vsel %vm1569, %v1346, 0
        %2003 = vmatpush.bf16.msra.mxu0 %v1926
        %2004 = vmatpush.bf16.msra.mxu0 %v1925
        %2005 = vmatpush.bf16.msra.mxu0 %v1924
        %2006 = vmatpush.bf16.msra.mxu0 %v1923
        %2007 = vmatpush.bf16.msra.mxu0 %v1922
        %2008 = vmatpush.bf16.msra.mxu0 %v1921
        %2009 = vmatpush.bf16.msra.mxu0 %v1920
        %2010 = vmatpush.bf16.msra.mxu0 %v1919
        %2011 = vmatmul.bf16.gmra.mxu0 %v1636
        %v2012 = vpop.f32.mrf.mxu0
        %v2013 = vadd.f32 0.0, %v2012
        %v2014 = vpop.f32.mrf.mxu0
        %v2015 = vadd.f32 0.0, %v2014
        %2016 = vmatmul.bf16.gmra.mxu0 %v1639
        %v2017 = vpop.f32.mrf.mxu0
        %v2018 = vadd.f32 0.0, %v2017
        %v2019 = vpop.f32.mrf.mxu0
        %v2020 = vadd.f32 0.0, %v2019
        %2021 = vmatmul.bf16.gmra.mxu0 %v1642
        %v2022 = vpop.f32.mrf.mxu0
        %v2023 = vadd.f32 0.0, %v2022
        %v2024 = vpop.f32.mrf.mxu0
        %v2025 = vadd.f32 0.0, %v2024
        %2026 = vmatmul.bf16.gmra.mxu0 %v1645
        %v2027 = vpop.f32.mrf.mxu0
        %v2028 = vadd.f32 0.0, %v2027
        %v2029 = vpop.f32.mrf.mxu0
        %v2030 = vadd.f32 0.0, %v2029
        %2031 = vmatmul.bf16.gmra.mxu0 %v1648
        %v2032 = vpop.f32.mrf.mxu0
        %v2033 = vadd.f32 0.0, %v2032
        %v2034 = vpop.f32.mrf.mxu0
        %v2035 = vadd.f32 0.0, %v2034
        %2036 = vmatmul.bf16.gmra.mxu0 %v1651
        %v2037 = vpop.f32.mrf.mxu0
        %v2038 = vadd.f32 0.0, %v2037
        %v2039 = vpop.f32.mrf.mxu0
        %v2040 = vadd.f32 0.0, %v2039
        %2041 = vmatmul.bf16.gmra.mxu0 %v1654
        %v2042 = vpop.f32.mrf.mxu0
        %v2043 = vadd.f32 0.0, %v2042
        %v2044 = vpop.f32.mrf.mxu0
        %v2045 = vadd.f32 0.0, %v2044
        %2046 = vmatmul.bf16.gmra.mxu0 %v1657
        %v2047 = vpop.f32.mrf.mxu0
        %v2048 = vadd.f32 0.0, %v2047
        %v2049 = vpop.f32.mrf.mxu0
        %v2050 = vadd.f32 0.0, %v2049
        %2051 = vmatmul.bf16.gmra.mxu0 %v1660
        %v2052 = vpop.f32.mrf.mxu0
        %v2053 = vadd.f32 0.0, %v2052
        %v2054 = vpop.f32.mrf.mxu0
        %v2055 = vadd.f32 0.0, %v2054
        %2056 = vmatmul.bf16.gmra.mxu0 %v1663
        %v2057 = vpop.f32.mrf.mxu0
        %v2058 = vadd.f32 0.0, %v2057
        %v2059 = vpop.f32.mrf.mxu0
        %v2060 = vadd.f32 0.0, %v2059
        %2061 = vmatmul.bf16.gmra.mxu0 %v1666
        %v2062 = vpop.f32.mrf.mxu0
        %v2063 = vadd.f32 0.0, %v2062
        %v2064 = vpop.f32.mrf.mxu0
        %v2065 = vadd.f32 0.0, %v2064
        %2066 = vmatmul.bf16.gmra.mxu0 %v1669
        %v2067 = vpop.f32.mrf.mxu0
        %v2068 = vadd.f32 0.0, %v2067
        %v2069 = vpop.f32.mrf.mxu0
        %v2070 = vadd.f32 0.0, %v2069
        %2071 = vmatmul.bf16.gmra.mxu0 %v1672
        %v2072 = vpop.f32.mrf.mxu0
        %v2073 = vadd.f32 0.0, %v2072
        %v2074 = vpop.f32.mrf.mxu0
        %v2075 = vadd.f32 0.0, %v2074
        %2076 = vmatmul.bf16.gmra.mxu0 %v1675
        %v2077 = vpop.f32.mrf.mxu0
        %v2078 = vadd.f32 0.0, %v2077
        %v2079 = vpop.f32.mrf.mxu0
        %v2080 = vadd.f32 0.0, %v2079
        %2081 = vmatmul.bf16.gmra.mxu0 %v1678
        %v2082 = vpop.f32.mrf.mxu0
        %v2083 = vadd.f32 0.0, %v2082
        %v2084 = vpop.f32.mrf.mxu0
        %v2085 = vadd.f32 0.0, %v2084
        %2086 = vmatmul.bf16.gmra.mxu0 %v1681
        %v2087 = vpop.f32.mrf.mxu0
        %v2088 = vadd.f32 0.0, %v2087
        %v2089 = vpop.f32.mrf.mxu0
        %v2090 = vadd.f32 0.0, %v2089
        %2091 = vdwg.mxu0
        %2092 = vmatpush.bf16.msra.mxu0 %v1934
        %2093 = vmatpush.bf16.msra.mxu0 %v1933
        %2094 = vmatpush.bf16.msra.mxu0 %v1932
        %2095 = vmatpush.bf16.msra.mxu0 %v1931
        %2096 = vmatpush.bf16.msra.mxu0 %v1930
        %2097 = vmatpush.bf16.msra.mxu0 %v1929
        %2098 = vmatpush.bf16.msra.mxu0 %v1928
        %2099 = vmatpush.bf16.msra.mxu0 %v1927
        %2100 = vmatmul.bf16.gmra.mxu0 %v1764
        %v2101 = vpop.f32.mrf.mxu0
        %v2102 = vadd.f32 %v2013, %v2101
        %v2103 = vpop.f32.mrf.mxu0
        %v2104 = vadd.f32 %v2015, %v2103
        %2105 = vmatmul.bf16.gmra.mxu0 %v1767
        %v2106 = vpop.f32.mrf.mxu0
        %v2107 = vadd.f32 %v2018, %v2106
        %v2108 = vpop.f32.mrf.mxu0
        %v2109 = vadd.f32 %v2020, %v2108
        %2110 = vmatmul.bf16.gmra.mxu0 %v1770
        %v2111 = vpop.f32.mrf.mxu0
        %v2112 = vadd.f32 %v2023, %v2111
        %v2113 = vpop.f32.mrf.mxu0
        %v2114 = vadd.f32 %v2025, %v2113
        %2115 = vmatmul.bf16.gmra.mxu0 %v1773
        %v2116 = vpop.f32.mrf.mxu0
        %v2117 = vadd.f32 %v2028, %v2116
        %v2118 = vpop.f32.mrf.mxu0
        %v2119 = vadd.f32 %v2030, %v2118
        %2120 = vmatmul.bf16.gmra.mxu0 %v1776
        %v2121 = vpop.f32.mrf.mxu0
        %v2122 = vadd.f32 %v2033, %v2121
        %v2123 = vpop.f32.mrf.mxu0
        %v2124 = vadd.f32 %v2035, %v2123
        %2125 = vmatmul.bf16.gmra.mxu0 %v1779
        %v2126 = vpop.f32.mrf.mxu0
        %v2127 = vadd.f32 %v2038, %v2126
        %v2128 = vpop.f32.mrf.mxu0
        %v2129 = vadd.f32 %v2040, %v2128
        %2130 = vmatmul.bf16.gmra.mxu0 %v1782
        %v2131 = vpop.f32.mrf.mxu0
        %v2132 = vadd.f32 %v2043, %v2131
        %v2133 = vpop.f32.mrf.mxu0
        %v2134 = vadd.f32 %v2045, %v2133
        %2135 = vmatmul.bf16.gmra.mxu0 %v1785
        %v2136 = vpop.f32.mrf.mxu0
        %v2137 = vadd.f32 %v2048, %v2136
        %v2138 = vpop.f32.mrf.mxu0
        %v2139 = vadd.f32 %v2050, %v2138
        %2140 = vmatmul.bf16.gmra.mxu0 %v1788
        %v2141 = vpop.f32.mrf.mxu0
        %v2142 = vadd.f32 %v2053, %v2141
        %v2143 = vpop.f32.mrf.mxu0
        %v2144 = vadd.f32 %v2055, %v2143
        %2145 = vmatmul.bf16.gmra.mxu0 %v1791
        %v2146 = vpop.f32.mrf.mxu0
        %v2147 = vadd.f32 %v2058, %v2146
        %v2148 = vpop.f32.mrf.mxu0
        %v2149 = vadd.f32 %v2060, %v2148
        %2150 = vmatmul.bf16.gmra.mxu0 %v1794
        %v2151 = vpop.f32.mrf.mxu0
        %v2152 = vadd.f32 %v2063, %v2151
        %v2153 = vpop.f32.mrf.mxu0
        %v2154 = vadd.f32 %v2065, %v2153
        %2155 = vmatmul.bf16.gmra.mxu0 %v1797
        %v2156 = vpop.f32.mrf.mxu0
        %v2157 = vadd.f32 %v2068, %v2156
        %v2158 = vpop.f32.mrf.mxu0
        %v2159 = vadd.f32 %v2070, %v2158
        %2160 = vmatmul.bf16.gmra.mxu0 %v1800
        %v2161 = vpop.f32.mrf.mxu0
        %v2162 = vadd.f32 %v2073, %v2161
        %v2163 = vpop.f32.mrf.mxu0
        %v2164 = vadd.f32 %v2075, %v2163
        %2165 = vmatmul.bf16.gmra.mxu0 %v1803
        %v2166 = vpop.f32.mrf.mxu0
        %v2167 = vadd.f32 %v2078, %v2166
        %v2168 = vpop.f32.mrf.mxu0
        %v2169 = vadd.f32 %v2080, %v2168
        %2170 = vmatmul.bf16.gmra.mxu0 %v1806
        %v2171 = vpop.f32.mrf.mxu0
        %v2172 = vadd.f32 %v2083, %v2171
        %v2173 = vpop.f32.mrf.mxu0
        %v2174 = vadd.f32 %v2085, %v2173
        %2175 = vmatmul.bf16.gmra.mxu0 %v1809
        %v2176 = vpop.f32.mrf.mxu0
        %v2177 = vadd.f32 %v2088, %v2176
        %v2178 = vpop.f32.mrf.mxu0
        %v2179 = vadd.f32 %v2090, %v2178
        %2180 = vdwg.mxu0
        %2181 = vmatpush.bf16.msra.mxu0 0
        %2182 = vmatpush.bf16.msra.mxu0 0
        %2183 = vmatpush.bf16.msra.mxu0 0
        %2184 = vmatpush.bf16.msra.mxu0 0
        %2185 = vmatpush.bf16.msra.mxu0 0
        %2186 = vmatpush.bf16.msra.mxu0 0
        %2187 = vmatpush.bf16.msra.mxu0 %v1936
        %2188 = vmatpush.bf16.msra.mxu0 %v1935
        %2189 = vmatmul.bf16.gmra.mxu0 %v1956
        %v2190 = vpop.f32.mrf.mxu0
        %v2191 = vadd.f32 %v2102, %v2190
        %v2192 = vpop.f32.mrf.mxu0
        %v2193 = vadd.f32 %v2104, %v2192
        %2194 = vmatmul.bf16.gmra.mxu0 %v1959
        %v2195 = vpop.f32.mrf.mxu0
        %v2196 = vadd.f32 %v2107, %v2195
        %v2197 = vpop.f32.mrf.mxu0
        %v2198 = vadd.f32 %v2109, %v2197
        %2199 = vmatmul.bf16.gmra.mxu0 %v1962
        %v2200 = vpop.f32.mrf.mxu0
        %v2201 = vadd.f32 %v2112, %v2200
        %v2202 = vpop.f32.mrf.mxu0
        %v2203 = vadd.f32 %v2114, %v2202
        %2204 = vmatmul.bf16.gmra.mxu0 %v1965
        %v2205 = vpop.f32.mrf.mxu0
        %v2206 = vadd.f32 %v2117, %v2205
        %v2207 = vpop.f32.mrf.mxu0
        %v2208 = vadd.f32 %v2119, %v2207
        %2209 = vmatmul.bf16.gmra.mxu0 %v1968
        %v2210 = vpop.f32.mrf.mxu0
        %v2211 = vadd.f32 %v2122, %v2210
        %v2212 = vpop.f32.mrf.mxu0
        %v2213 = vadd.f32 %v2124, %v2212
        %2214 = vmatmul.bf16.gmra.mxu0 %v1971
        %v2215 = vpop.f32.mrf.mxu0
        %v2216 = vadd.f32 %v2127, %v2215
        %v2217 = vpop.f32.mrf.mxu0
        %v2218 = vadd.f32 %v2129, %v2217
        %2219 = vmatmul.bf16.gmra.mxu0 %v1974
        %v2220 = vpop.f32.mrf.mxu0
        %v2221 = vadd.f32 %v2132, %v2220
        %v2222 = vpop.f32.mrf.mxu0
        %v2223 = vadd.f32 %v2134, %v2222
        %2224 = vmatmul.bf16.gmra.mxu0 %v1977
        %v2225 = vpop.f32.mrf.mxu0
        %v2226 = vadd.f32 %v2137, %v2225
        %v2227 = vpop.f32.mrf.mxu0
        %v2228 = vadd.f32 %v2139, %v2227
        %2229 = vmatmul.bf16.gmra.mxu0 %v1980
        %v2230 = vpop.f32.mrf.mxu0
        %v2231 = vadd.f32 %v2142, %v2230
        %v2232 = vpop.f32.mrf.mxu0
        %v2233 = vadd.f32 %v2144, %v2232
        %2234 = vmatmul.bf16.gmra.mxu0 %v1983
        %v2235 = vpop.f32.mrf.mxu0
        %v2236 = vadd.f32 %v2147, %v2235
        %v2237 = vpop.f32.mrf.mxu0
        %v2238 = vadd.f32 %v2149, %v2237
        %2239 = vmatmul.bf16.gmra.mxu0 %v1986
        %v2240 = vpop.f32.mrf.mxu0
        %v2241 = vadd.f32 %v2152, %v2240
        %v2242 = vpop.f32.mrf.mxu0
        %v2243 = vadd.f32 %v2154, %v2242
        %2244 = vmatmul.bf16.gmra.mxu0 %v1989
        %v2245 = vpop.f32.mrf.mxu0
        %v2246 = vadd.f32 %v2157, %v2245
        %v2247 = vpop.f32.mrf.mxu0
        %v2248 = vadd.f32 %v2159, %v2247
        %2249 = vmatmul.bf16.gmra.mxu0 %v1992
        %v2250 = vpop.f32.mrf.mxu0
        %v2251 = vadd.f32 %v2162, %v2250
        %v2252 = vpop.f32.mrf.mxu0
        %v2253 = vadd.f32 %v2164, %v2252
        %2254 = vmatmul.bf16.gmra.mxu0 %v1995
        %v2255 = vpop.f32.mrf.mxu0
        %v2256 = vadd.f32 %v2167, %v2255
        %v2257 = vpop.f32.mrf.mxu0
        %v2258 = vadd.f32 %v2169, %v2257
        %2259 = vmatmul.bf16.gmra.mxu0 %v1998
        %v2260 = vpop.f32.mrf.mxu0
        %v2261 = vadd.f32 %v2172, %v2260
        %v2262 = vpop.f32.mrf.mxu0
        %v2263 = vadd.f32 %v2174, %v2262
        %2264 = vmatmul.bf16.gmra.mxu0 %v2001
        %v2265 = vpop.f32.mrf.mxu0
        %v2266 = vadd.f32 %v2177, %v2265
        %v2267 = vpop.f32.mrf.mxu0
        %v2268 = vadd.f32 %v2179, %v2267
        %2269 = vdwg.mxu0
        %v2270 = vld [vmem:[%s5] sm:$0x1]
        %v2272 = vperm.slane %v2270, 0
        %v2274 = vmul.f32 %v2191, %v2272
        %v2275 = vmul.f32 %v2193, %v2272
        %v2276 = vmul.f32 %v2196, %v2272
        %v2277 = vmul.f32 %v2198, %v2272
        %v2278 = vmul.f32 %v2201, %v2272
        %v2279 = vmul.f32 %v2203, %v2272
        %v2280 = vmul.f32 %v2206, %v2272
        %v2281 = vmul.f32 %v2208, %v2272
        %v2282 = vmul.f32 %v2211, %v2272
        %v2283 = vmul.f32 %v2213, %v2272
        %v2284 = vmul.f32 %v2216, %v2272
        %v2285 = vmul.f32 %v2218, %v2272
        %v2286 = vmul.f32 %v2221, %v2272
        %v2287 = vmul.f32 %v2223, %v2272
        %v2288 = vmul.f32 %v2226, %v2272
        %v2289 = vmul.f32 %v2228, %v2272
        %v2290 = vmul.f32 %v2231, %v2272
        %v2291 = vmul.f32 %v2233, %v2272
        %v2292 = vmul.f32 %v2236, %v2272
        %v2293 = vmul.f32 %v2238, %v2272
        %v2294 = vmul.f32 %v2241, %v2272
        %v2295 = vmul.f32 %v2243, %v2272
        %v2296 = vmul.f32 %v2246, %v2272
        %v2297 = vmul.f32 %v2248, %v2272
        %v2298 = vmul.f32 %v2251, %v2272
        %v2299 = vmul.f32 %v2253, %v2272
        %v2300 = vmul.f32 %v2256, %v2272
        %v2301 = vmul.f32 %v2258, %v2272
        %v2302 = vmul.f32 %v2261, %v2272
        %v2303 = vmul.f32 %v2263, %v2272
        %v2304 = vmul.f32 %v2266, %v2272
        %v2305 = vmul.f32 %v2268, %v2272
        %v2306 = vld [vmem:[%s6] sm:$0x1]
        %v2308 = vperm.slane %v2306, 0
        %v2310 = vadd.f32 %v2274, %v2308
        %v2311 = vadd.f32 %v2275, %v2308
        %v2312 = vadd.f32 %v2276, %v2308
        %v2313 = vadd.f32 %v2277, %v2308
        %v2314 = vadd.f32 %v2278, %v2308
        %v2315 = vadd.f32 %v2279, %v2308
        %v2316 = vadd.f32 %v2280, %v2308
        %v2317 = vadd.f32 %v2281, %v2308
        %v2318 = vadd.f32 %v2282, %v2308
        %v2319 = vadd.f32 %v2283, %v2308
        %v2320 = vadd.f32 %v2284, %v2308
        %v2321 = vadd.f32 %v2285, %v2308
        %v2322 = vadd.f32 %v2286, %v2308
        %v2323 = vadd.f32 %v2287, %v2308
        %v2324 = vadd.f32 %v2288, %v2308
        %v2325 = vadd.f32 %v2289, %v2308
        %v2326 = vadd.f32 %v2290, %v2308
        %v2327 = vadd.f32 %v2291, %v2308
        %v2328 = vadd.f32 %v2292, %v2308
        %v2329 = vadd.f32 %v2293, %v2308
        %v2330 = vadd.f32 %v2294, %v2308
        %v2331 = vadd.f32 %v2295, %v2308
        %v2332 = vadd.f32 %v2296, %v2308
        %v2333 = vadd.f32 %v2297, %v2308
        %v2334 = vadd.f32 %v2298, %v2308
        %v2335 = vadd.f32 %v2299, %v2308
        %v2336 = vadd.f32 %v2300, %v2308
        %v2337 = vadd.f32 %v2301, %v2308
        %v2338 = vadd.f32 %v2302, %v2308
        %v2339 = vadd.f32 %v2303, %v2308
        %v2340 = vadd.f32 %v2304, %v2308
        %v2341 = vadd.f32 %v2305, %v2308
        %v2342 = vmax.f32 %v2310, 0.0
        %v2343 = vmax.f32 %v2311, 0.0
        %v2344 = vmax.f32 %v2312, 0.0
        %v2345 = vmax.f32 %v2313, 0.0
        %v2346 = vmax.f32 %v2314, 0.0
        %v2347 = vmax.f32 %v2315, 0.0
        %v2348 = vmax.f32 %v2316, 0.0
        %v2349 = vmax.f32 %v2317, 0.0
        %v2350 = vmax.f32 %v2318, 0.0
        %v2351 = vmax.f32 %v2319, 0.0
        %v2352 = vmax.f32 %v2320, 0.0
        %v2353 = vmax.f32 %v2321, 0.0
        %v2354 = vmax.f32 %v2322, 0.0
        %v2355 = vmax.f32 %v2323, 0.0
        %v2356 = vmax.f32 %v2324, 0.0
        %v2357 = vmax.f32 %v2325, 0.0
        %v2358 = vmax.f32 %v2326, 0.0
        %v2359 = vmax.f32 %v2327, 0.0
        %v2360 = vmax.f32 %v2328, 0.0
        %v2361 = vmax.f32 %v2329, 0.0
        %v2362 = vmax.f32 %v2330, 0.0
        %v2363 = vmax.f32 %v2331, 0.0
        %v2364 = vmax.f32 %v2332, 0.0
        %v2365 = vmax.f32 %v2333, 0.0
        %v2366 = vmax.f32 %v2334, 0.0
        %v2367 = vmax.f32 %v2335, 0.0
        %v2368 = vmax.f32 %v2336, 0.0
        %v2369 = vmax.f32 %v2337, 0.0
        %v2370 = vmax.f32 %v2338, 0.0
        %v2371 = vmax.f32 %v2339, 0.0
        %v2372 = vmax.f32 %v2340, 0.0
        %v2373 = vmax.f32 %v2341, 0.0
        %v2374 = vadd.f32 %v2342, %v2344
        %v2375 = vadd.f32 %v2343, %v2345
        %v2376 = vadd.f32 %v2346, %v2348
        %v2377 = vadd.f32 %v2347, %v2349
        %v2378 = vadd.f32 %v2350, %v2352
        %v2379 = vadd.f32 %v2351, %v2353
        %v2380 = vadd.f32 %v2354, %v2356
        %v2381 = vadd.f32 %v2355, %v2357
        %v2382 = vadd.f32 %v2358, %v2360
        %v2383 = vadd.f32 %v2359, %v2361
        %v2384 = vadd.f32 %v2362, %v2364
        %v2385 = vadd.f32 %v2363, %v2365
        %v2386 = vadd.f32 %v2366, %v2368
        %v2387 = vadd.f32 %v2367, %v2369
        %v2388 = vadd.f32 %v2370, %v2372
        %v2389 = vadd.f32 %v2371, %v2373
        %2390 = vst.msk [vmem:[#allocation2] sm:$0xff] %vm1569, %v2374
        %2391 = vst.msk [vmem:[#allocation2 + $0x8] sm:$0xff] %vm1569, %v2375
        %2392 = vst.msk [vmem:[#allocation2 + $0x10] sm:$0xff] %vm1569, %v2376
        %2393 = vst.msk [vmem:[#allocation2 + $0x18] sm:$0xff] %vm1569, %v2377
        %2394 = vst.msk [vmem:[#allocation2 + $0x20] sm:$0xff] %vm1569, %v2378
        %2395 = vst.msk [vmem:[#allocation2 + $0x28] sm:$0xff] %vm1569, %v2379
        %2396 = vst.msk [vmem:[#allocation2 + $0x30] sm:$0xff] %vm1569, %v2380
        %2397 = vst.msk [vmem:[#allocation2 + $0x38] sm:$0xff] %vm1569, %v2381
        %2398 = vst.msk [vmem:[#allocation2 + $0x40] sm:$0xff] %vm1569, %v2382
        %2399 = vst.msk [vmem:[#allocation2 + $0x48] sm:$0xff] %vm1569, %v2383
        %2400 = vst.msk [vmem:[#allocation2 + $0x50] sm:$0xff] %vm1569, %v2384
        %2401 = vst.msk [vmem:[#allocation2 + $0x58] sm:$0xff] %vm1569, %v2385
        %2402 = vst.msk [vmem:[#allocation2 + $0x60] sm:$0xff] %vm1569, %v2386
        %2403 = vst.msk [vmem:[#allocation2 + $0x68] sm:$0xff] %vm1569, %v2387
        %2404 = vst.msk [vmem:[#allocation2 + $0x70] sm:$0xff] %vm1569, %v2388
        %2405 = vst.msk [vmem:[#allocation2 + $0x78] sm:$0xff] %vm1569, %v2389
        %v2406 = vld [vmem:[#allocation2] ss:$2 sm:$0xff]
        %s2407 = scalar_lea.vmem [#allocation2], 16
        %v2408 = vld [vmem:[%s2407] ss:$2 sm:$0xff]
        %s2409 = scalar_lea.vmem [#allocation2], 32
        %v2410 = vld [vmem:[%s2409] ss:$2 sm:$0xff]
        %s2411 = scalar_lea.vmem [#allocation2], 48
        %v2412 = vld [vmem:[%s2411] ss:$2 sm:$0xff]
        %s2413 = scalar_lea.vmem [#allocation2], 64
        %v2414 = vld [vmem:[%s2413] ss:$2 sm:$0xff]
        %s2415 = scalar_lea.vmem [#allocation2], 80
        %v2416 = vld [vmem:[%s2415] ss:$2 sm:$0xff]
        %s2417 = scalar_lea.vmem [#allocation2], 96
        %v2418 = vld [vmem:[%s2417] ss:$2 sm:$0xff]
        %s2419 = scalar_lea.vmem [#allocation2], 112
        %v2420 = vld [vmem:[%s2419] ss:$2 sm:$0xff]
        %s2421 = scalar_lea.vmem [#allocation2], 1
        %v2422 = vld [vmem:[%s2421] ss:$2 sm:$0xff]
        %s2423 = scalar_lea.vmem [#allocation2], 17
        %v2424 = vld [vmem:[%s2423] ss:$2 sm:$0xff]
        %s2425 = scalar_lea.vmem [#allocation2], 33
        %v2426 = vld [vmem:[%s2425] ss:$2 sm:$0xff]
        %s2427 = scalar_lea.vmem [#allocation2], 49
        %v2428 = vld [vmem:[%s2427] ss:$2 sm:$0xff]
        %s2429 = scalar_lea.vmem [#allocation2], 65
        %v2430 = vld [vmem:[%s2429] ss:$2 sm:$0xff]
        %s2431 = scalar_lea.vmem [#allocation2], 81
        %v2432 = vld [vmem:[%s2431] ss:$2 sm:$0xff]
        %s2433 = scalar_lea.vmem [#allocation2], 97
        %v2434 = vld [vmem:[%s2433] ss:$2 sm:$0xff]
        %s2435 = scalar_lea.vmem [#allocation2], 113
        %v2436 = vld [vmem:[%s2435] ss:$2 sm:$0xff]
        %v2437 = vadd.f32 %v2406, %v2422
        %v2438 = vadd.f32 %v2408, %v2424
        %v2439 = vadd.f32 %v2410, %v2426
        %v2440 = vadd.f32 %v2412, %v2428
        %v2441 = vadd.f32 %v2414, %v2430
        %v2442 = vadd.f32 %v2416, %v2432
        %v2443 = vadd.f32 %v2418, %v2434
        %v2444 = vadd.f32 %v2420, %v2436
        %v2445 = vmul.f32 %v2437, 0.25
        %v2446 = vmul.f32 %v2438, 0.25
        %v2447 = vmul.f32 %v2439, 0.25
        %v2448 = vmul.f32 %v2440, 0.25
        %v2449 = vmul.f32 %v2441, 0.25
        %v2450 = vmul.f32 %v2442, 0.25
        %v2451 = vmul.f32 %v2443, 0.25
        %v2452 = vmul.f32 %v2444, 0.25
        %v2453 = vpack.c.bf16 %v2446, %v2445
        %v2454 = vpack.c.bf16 %v2448, %v2447
        %v2455 = vpack.c.bf16 %v2450, %v2449
        %v2456 = vpack.c.bf16 %v2452, %v2451
        %v2457 = vld [vmem:[%s7] sm:$0xf]
        %v2458 = vld [vmem:[%s7 + $0x4] sm:$0xf]
        %v2459 = vld [vmem:[%s7 + $0x8] sm:$0xf]
        %v2460 = vld [vmem:[%s7 + $0xc] sm:$0xf]
        %v2465 = vunpack.c.l.b16 %v2457
        %v2466 = vunpack.c.l.b16 %v2458
        %v2467 = vunpack.c.l.b16 %v2459
        %v2468 = vunpack.c.l.b16 %v2460
        %v2469 = vpack.c.b16 %v2466, %v2465
        %v2470 = vpack.c.b16 %v2468, %v2467
        %v2474 = vsel %vm1569, %v2453, 0
        %v2477 = vsel %vm1569, %v2454, 0
        %v2480 = vsel %vm1569, %v2455, 0
        %v2483 = vsel %vm1569, %v2456, 0
        %2485 = vmatpush.bf16.msra.mxu0 0
        %2486 = vmatpush.bf16.msra.mxu0 0
        %2487 = vmatpush.bf16.msra.mxu0 0
        %2488 = vmatpush.bf16.msra.mxu0 0
        %2489 = vmatpush.bf16.msra.mxu0 0
        %2490 = vmatpush.bf16.msra.mxu0 0
        %2491 = vmatpush.bf16.msra.mxu0 %v2470
        %2492 = vmatpush.bf16.msra.mxu0 %v2469
        %2493 = vmatmul.bf16.gmra.mxu0 %v2474
        %v2494 = vpop.f32.mrf.mxu0
        %v2495 = vadd.f32 0.0, %v2494
        %v2496 = vpop.f32.mrf.mxu0
        %v2497 = vadd.f32 0.0, %v2496
        %2498 = vmatmul.bf16.gmra.mxu0 %v2477
        %v2499 = vpop.f32.mrf.mxu0
        %v2500 = vadd.f32 0.0, %v2499
        %v2501 = vpop.f32.mrf.mxu0
        %v2502 = vadd.f32 0.0, %v2501
        %2503 = vmatmul.bf16.gmra.mxu0 %v2480
        %v2504 = vpop.f32.mrf.mxu0
        %v2505 = vadd.f32 0.0, %v2504
        %v2506 = vpop.f32.mrf.mxu0
        %v2507 = vadd.f32 0.0, %v2506
        %2508 = vmatmul.bf16.gmra.mxu0 %v2483
        %v2509 = vpop.f32.mrf.mxu0
        %v2510 = vadd.f32 0.0, %v2509
        %v2511 = vpop.f32.mrf.mxu0
        %v2512 = vadd.f32 0.0, %v2511
        %2513 = vdwg.mxu0
        %v2514 = vld [vmem:[%s8] sm:$0x1]
        %v2516 = vperm.slane %v2514, 0
        %v2518 = vmul.f32 %v2495, %v2516
        %v2519 = vmul.f32 %v2497, %v2516
        %v2520 = vmul.f32 %v2500, %v2516
        %v2521 = vmul.f32 %v2502, %v2516
        %v2522 = vmul.f32 %v2505, %v2516
        %v2523 = vmul.f32 %v2507, %v2516
        %v2524 = vmul.f32 %v2510, %v2516
        %v2525 = vmul.f32 %v2512, %v2516
        %v2526 = vld [vmem:[%s9] sm:$0x1]
        %v2528 = vperm.slane %v2526, 0
        %v2530 = vadd.f32 %v2518, %v2528
        %v2531 = vadd.f32 %v2519, %v2528
        %v2532 = vadd.f32 %v2520, %v2528
        %v2533 = vadd.f32 %v2521, %v2528
        %v2534 = vadd.f32 %v2522, %v2528
        %v2535 = vadd.f32 %v2523, %v2528
        %v2536 = vadd.f32 %v2524, %v2528
        %v2537 = vadd.f32 %v2525, %v2528
        %v2538 = vadd.f32 %v462, %v464
        %v2539 = vadd.f32 %v463, %v465
        %v2540 = vadd.f32 %v466, %v468
        %v2541 = vadd.f32 %v467, %v469
        %v2542 = vadd.f32 %v470, %v472
        %v2543 = vadd.f32 %v471, %v473
        %v2544 = vadd.f32 %v474, %v476
        %v2545 = vadd.f32 %v475, %v477
        %v2546 = vadd.f32 %v478, %v480
        %v2547 = vadd.f32 %v479, %v481
        %v2548 = vadd.f32 %v482, %v484
        %v2549 = vadd.f32 %v483, %v485
        %v2550 = vadd.f32 %v486, %v488
        %v2551 = vadd.f32 %v487, %v489
        %v2552 = vadd.f32 %v490, %v492
        %v2553 = vadd.f32 %v491, %v493
        %2554 = vst.msk [vmem:[#allocation3] sm:$0xff] %vm542, %v2538
        %2555 = vst.msk [vmem:[#allocation3 + $0x8] sm:$0xff] %vm542, %v2539
        %2556 = vst.msk [vmem:[#allocation3 + $0x10] sm:$0xff] %vm542, %v2540
        %2557 = vst.msk [vmem:[#allocation3 + $0x18] sm:$0xff] %vm542, %v2541
        %2558 = vst.msk [vmem:[#allocation3 + $0x20] sm:$0xff] %vm542, %v2542
        %2559 = vst.msk [vmem:[#allocation3 + $0x28] sm:$0xff] %vm542, %v2543
        %2560 = vst.msk [vmem:[#allocation3 + $0x30] sm:$0xff] %vm542, %v2544
        %2561 = vst.msk [vmem:[#allocation3 + $0x38] sm:$0xff] %vm542, %v2545
        %2562 = vst.msk [vmem:[#allocation3 + $0x40] sm:$0xff] %vm542, %v2546
        %2563 = vst.msk [vmem:[#allocation3 + $0x48] sm:$0xff] %vm542, %v2547
        %2564 = vst.msk [vmem:[#allocation3 + $0x50] sm:$0xff] %vm542, %v2548
        %2565 = vst.msk [vmem:[#allocation3 + $0x58] sm:$0xff] %vm542, %v2549
        %2566 = vst.msk [vmem:[#allocation3 + $0x60] sm:$0xff] %vm542, %v2550
        %2567 = vst.msk [vmem:[#allocation3 + $0x68] sm:$0xff] %vm542, %v2551
        %2568 = vst.msk [vmem:[#allocation3 + $0x70] sm:$0xff] %vm542, %v2552
        %2569 = vst.msk [vmem:[#allocation3 + $0x78] sm:$0xff] %vm542, %v2553
        %v2570 = vld [vmem:[#allocation3] ss:$2 sm:$0xff]
        %s2571 = scalar_lea.vmem [#allocation3], 16
        %v2572 = vld [vmem:[%s2571] ss:$2 sm:$0xff]
        %s2573 = scalar_lea.vmem [#allocation3], 32
        %v2574 = vld [vmem:[%s2573] ss:$2 sm:$0xff]
        %s2575 = scalar_lea.vmem [#allocation3], 48
        %v2576 = vld [vmem:[%s2575] ss:$2 sm:$0xff]
        %s2577 = scalar_lea.vmem [#allocation3], 64
        %v2578 = vld [vmem:[%s2577] ss:$2 sm:$0xff]
        %s2579 = scalar_lea.vmem [#allocation3], 80
        %v2580 = vld [vmem:[%s2579] ss:$2 sm:$0xff]
        %s2581 = scalar_lea.vmem [#allocation3], 96
        %v2582 = vld [vmem:[%s2581] ss:$2 sm:$0xff]
        %s2583 = scalar_lea.vmem [#allocation3], 112
        %v2584 = vld [vmem:[%s2583] ss:$2 sm:$0xff]
        %s2585 = scalar_lea.vmem [#allocation3], 1
        %v2586 = vld [vmem:[%s2585] ss:$2 sm:$0xff]
        %s2587 = scalar_lea.vmem [#allocation3], 17
        %v2588 = vld [vmem:[%s2587] ss:$2 sm:$0xff]
        %s2589 = scalar_lea.vmem [#allocation3], 33
        %v2590 = vld [vmem:[%s2589] ss:$2 sm:$0xff]
        %s2591 = scalar_lea.vmem [#allocation3], 49
        %v2592 = vld [vmem:[%s2591] ss:$2 sm:$0xff]
        %s2593 = scalar_lea.vmem [#allocation3], 65
        %v2594 = vld [vmem:[%s2593] ss:$2 sm:$0xff]
        %s2595 = scalar_lea.vmem [#allocation3], 81
        %v2596 = vld [vmem:[%s2595] ss:$2 sm:$0xff]
        %s2597 = scalar_lea.vmem [#allocation3], 97
        %v2598 = vld [vmem:[%s2597] ss:$2 sm:$0xff]
        %s2599 = scalar_lea.vmem [#allocation3], 113
        %v2600 = vld [vmem:[%s2599] ss:$2 sm:$0xff]
        %v2601 = vadd.f32 %v2570, %v2586
        %v2602 = vadd.f32 %v2572, %v2588
        %v2603 = vadd.f32 %v2574, %v2590
        %v2604 = vadd.f32 %v2576, %v2592
        %v2605 = vadd.f32 %v2578, %v2594
        %v2606 = vadd.f32 %v2580, %v2596
        %v2607 = vadd.f32 %v2582, %v2598
        %v2608 = vadd.f32 %v2584, %v2600
        %v2609 = vmul.f32 %v2601, 0.25
        %v2610 = vmul.f32 %v2602, 0.25
        %v2611 = vmul.f32 %v2603, 0.25
        %v2612 = vmul.f32 %v2604, 0.25
        %v2613 = vmul.f32 %v2605, 0.25
        %v2614 = vmul.f32 %v2606, 0.25
        %v2615 = vmul.f32 %v2607, 0.25
        %v2616 = vmul.f32 %v2608, 0.25
        %v2617 = vpack.c.bf16 %v2610, %v2609
        %v2618 = vpack.c.bf16 %v2612, %v2611
        %v2619 = vpack.c.bf16 %v2614, %v2613
        %v2620 = vpack.c.bf16 %v2616, %v2615
        %v2621 = vld [vmem:[%s10] sm:$0xf]
        %v2622 = vld [vmem:[%s10 + $0x4] sm:$0xf]
        %v2623 = vld [vmem:[%s10 + $0x8] sm:$0xf]
        %v2624 = vld [vmem:[%s10 + $0xc] sm:$0xf]
        %v2625 = vld [vmem:[%s10 + $0x10] sm:$0xf]
        %v2626 = vld [vmem:[%s10 + $0x14] sm:$0xf]
        %v2627 = vld [vmem:[%s10 + $0x18] sm:$0xf]
        %v2628 = vld [vmem:[%s10 + $0x1c] sm:$0xf]
        %v2637 = vunpack.c.l.b16 %v2621
        %v2638 = vunpack.c.l.b16 %v2622
        %v2639 = vunpack.c.l.b16 %v2623
        %v2640 = vunpack.c.l.b16 %v2624
        %v2641 = vunpack.c.l.b16 %v2625
        %v2642 = vunpack.c.l.b16 %v2626
        %v2643 = vunpack.c.l.b16 %v2627
        %v2644 = vunpack.c.l.b16 %v2628
        %v2645 = vpack.c.b16 %v2638, %v2637
        %v2646 = vpack.c.b16 %v2640, %v2639
        %v2647 = vpack.c.b16 %v2642, %v2641
        %v2648 = vpack.c.b16 %v2644, %v2643
        %v2654 = vsel %vm542, %v2617, 0
        %v2657 = vsel %vm542, %v2618, 0
        %v2660 = vsel %vm542, %v2619, 0
        %v2663 = vsel %vm542, %v2620, 0
        %2665 = vmatpush.bf16.msra.mxu0 0
        %2666 = vmatpush.bf16.msra.mxu0 0
        %2667 = vmatpush.bf16.msra.mxu0 0
        %2668 = vmatpush.bf16.msra.mxu0 0
        %2669 = vmatpush.bf16.msra.mxu0 %v2648
        %2670 = vmatpush.bf16.msra.mxu0 %v2647
        %2671 = vmatpush.bf16.msra.mxu0 %v2646
        %2672 = vmatpush.bf16.msra.mxu0 %v2645
        %2673 = vmatmul.bf16.gmra.mxu0 %v2654
        %v2674 = vpop.f32.mrf.mxu0
        %v2675 = vadd.f32 0.0, %v2674
        %v2676 = vpop.f32.mrf.mxu0
        %v2677 = vadd.f32 0.0, %v2676
        %2678 = vmatmul.bf16.gmra.mxu0 %v2657
        %v2679 = vpop.f32.mrf.mxu0
        %v2680 = vadd.f32 0.0, %v2679
        %v2681 = vpop.f32.mrf.mxu0
        %v2682 = vadd.f32 0.0, %v2681
        %2683 = vmatmul.bf16.gmra.mxu0 %v2660
        %v2684 = vpop.f32.mrf.mxu0
        %v2685 = vadd.f32 0.0, %v2684
        %v2686 = vpop.f32.mrf.mxu0
        %v2687 = vadd.f32 0.0, %v2686
        %2688 = vmatmul.bf16.gmra.mxu0 %v2663
        %v2689 = vpop.f32.mrf.mxu0
        %v2690 = vadd.f32 0.0, %v2689
        %v2691 = vpop.f32.mrf.mxu0
        %v2692 = vadd.f32 0.0, %v2691
        %2693 = vdwg.mxu0
        %v2694 = vld [vmem:[%s11] sm:$0x1]
        %v2696 = vperm.slane %v2694, 0
        %v2698 = vmul.f32 %v2675, %v2696
        %v2699 = vmul.f32 %v2677, %v2696
        %v2700 = vmul.f32 %v2680, %v2696
        %v2701 = vmul.f32 %v2682, %v2696
        %v2702 = vmul.f32 %v2685, %v2696
        %v2703 = vmul.f32 %v2687, %v2696
        %v2704 = vmul.f32 %v2690, %v2696
        %v2705 = vmul.f32 %v2692, %v2696
        %v2706 = vld [vmem:[%s12] sm:$0x1]
        %v2708 = vperm.slane %v2706, 0
        %v2710 = vadd.f32 %v2698, %v2708
        %v2711 = vadd.f32 %v2699, %v2708
        %v2712 = vadd.f32 %v2700, %v2708
        %v2713 = vadd.f32 %v2701, %v2708
        %v2714 = vadd.f32 %v2702, %v2708
        %v2715 = vadd.f32 %v2703, %v2708
        %v2716 = vadd.f32 %v2704, %v2708
        %v2717 = vadd.f32 %v2705, %v2708
        %v2718 = vadd.f32 %v2530, %v2710
        %v2719 = vadd.f32 %v2531, %v2711
        %v2720 = vadd.f32 %v2532, %v2712
        %v2721 = vadd.f32 %v2533, %v2713
        %v2722 = vadd.f32 %v2534, %v2714
        %v2723 = vadd.f32 %v2535, %v2715
        %v2724 = vadd.f32 %v2536, %v2716
        %v2725 = vadd.f32 %v2537, %v2717
        %v2726 = vmax.f32 %v2718, 0.0
        %v2727 = vmax.f32 %v2719, 0.0
        %v2728 = vmax.f32 %v2720, 0.0
        %v2729 = vmax.f32 %v2721, 0.0
        %v2730 = vmax.f32 %v2722, 0.0
        %v2731 = vmax.f32 %v2723, 0.0
        %v2732 = vmax.f32 %v2724, 0.0
        %v2733 = vmax.f32 %v2725, 0.0
        %2734 = vst [vmem:[%s460] sm:$0xff] %v2726
        %2735 = vst [vmem:[%s460 + $0x8] sm:$0xff] %v2727
        %2736 = vst [vmem:[%s460 + $0x10] sm:$0xff] %v2728
        %2737 = vst [vmem:[%s460 + $0x18] sm:$0xff] %v2729
        %2738 = vst [vmem:[%s460 + $0x20] sm:$0xff] %v2730
        %2739 = vst [vmem:[%s460 + $0x28] sm:$0xff] %v2731
        %2740 = vst [vmem:[%s460 + $0x30] sm:$0xff] %v2732
        %2741 = vst [vmem:[%s460 + $0x38] sm:$0xff] %v2733
        %s2742 = sand.u32 %s316, 1
        %s2743 = scalar_lea.sflag [#allocation6], %s2742
        %s2744 = sand.u32 %s316, 1
        %s2745 = smul.addr %s2744, 64
        %s2746 = scalar_lea.vmem [#allocation7], %s2745
        // Predicated region
        $region77: #{tpu_custom_call.1} parent=71 // pred_check
          %p2747 = pneg %p326
        $region78: #{tpu_custom_call.1} parent=71 // pred_check_branch
          %2749 = sbr.rel (%p2747) target = $region80
        $region79: #{tpu_custom_call.1} parent=71 // pred_region
          %2751 = vsyncadd %s2743, 0
          %s2752 = smul.addr %s30, 8
          %s2753 = smul.addr %s2752, 8
          %s2754 = scalar_lea.hbm %s13, %s2753
          %s2755 = sshll.u32 %s2746, 4
          %s2756 = int_to_ptr.vmem [resolvable:$true] %s2755
          %s2757 = sshll.u32 %s2754, 4
          %s2758 = int_to_ptr.hbm [resolvable:$true] %s2757
          %2763 = dma.vmem_to_hbm [thread:$0]  %s2756, 1024, %s2758, %s2743, 128, 128, 8
        $region80: #{tpu_custom_call.1} parent=71 // pred_fallthru
          _
      $region72: #{tpu_custom_call.1} parent=5 // pred_fallthru
        _
      %p2764 = scmp.le.s32.totalorder 2, %s25
      // Predicated region
      $region81: #{tpu_custom_call.1} parent=5 // pred_check
        %p2765 = pneg %p2764
      $region82: #{tpu_custom_call.1} parent=5 // pred_check_branch
        %2767 = sbr.rel (%p2765) target = $region84
      $region83: #{tpu_custom_call.1} parent=5 // pred_region
        %s2768 = ssub.s32 %s25, 2
        // Predicated region
        $region85: #{tpu_custom_call.1} parent=83 // pred_check
          %p2769 = pneg %p332
        $region86: #{tpu_custom_call.1} parent=83 // pred_check_branch
          %2771 = sbr.rel (%p2769) target = $region88
        $region87: #{tpu_custom_call.1} parent=83 // pred_region
          %s2772 = sand.u32 %s317, 1
          %s2773 = scalar_lea.sflag [#allocation6], %s2772
          %s2774 = sand.u32 %s317, 1
          %s2775 = smul.addr %s2774, 64
          %s2776 = scalar_lea.vmem [#allocation7], %s2775
          %2778 = dma.done %s2773, 1024
        $region88: #{tpu_custom_call.1} parent=83 // pred_fallthru
          _
      $region84: #{tpu_custom_call.1} parent=5 // pred_fallthru
        _
    $region6: #{tpu_custom_call.1} parent=1 // loop_footer
      %s29 = sadd.s32 1, %s25
    $region7: #{tpu_custom_call.1} parent=1 // loop_footer_branch
      %24 = sbr.rel target = $region3
    $region8: #{tpu_custom_call.1} parent=1 // loop_exit
      _
    %2779 = vsyncpa [#allocation5], 1
    %s2780 = scalar_lea.sflag [#allocation5], 1
    %2781 = vsyncpa %s2780, 1
    %2782 = vsyncpa [#allocation6], 1
    %s2783 = scalar_lea.sflag [#allocation6], 1
    %2784 = vsyncpa %s2783, 1

</llo_original>
